<compile_context>
chip_gen: v5e
topology: v5e:2x2
jax: 0.10.0
libtpu: 0.0.40
codegen_flags: <defaults>
</compile_context>

<pallas_src>
import math
import functools

import jax
import jax.numpy as jnp
from jax.experimental import pallas as pl
from jax.experimental.pallas import tpu as pltpu


def _msa_kernel(x_ref, wq_ref, bq_ref, wkv_ref, bkv_ref, wp_ref, bp_ref,
                o_ref, kv_ref, q_ref, acc_ref, *, n_heads, dp):
    """One (batch, query-tile) grid point.

    x_ref  : (1, N, E)      bf16   full sequence for this batch (resident per batch)
    wq_ref : (E, H*Dp)      bf16   packed per-head Q weights, scale folded in
    bq_ref : (1, H*Dp)      f32    packed Q bias, scale folded in
    wkv_ref: (E, 2*H*Dp)    bf16   packed per-head [K | V] weights
    bkv_ref: (1, 2*H*Dp)    f32
    wp_ref : (H*Dp, E)      bf16   proj_back weight (transposed, head-row-padded)
    bp_ref : (1, E)         f32
    o_ref  : (1, TQ, E)     f32
    kv_ref : (2, N, H*Dp)   bf16   scratch: K (idx 0) / V (idx 1), per batch
    q_ref  : (TQ, H*Dp)     bf16   scratch: Q for this query tile
    acc_ref: (TQ, E)        f32    scratch: attention + proj_back accumulator
    """
    H, Dp = n_heads, dp
    HDp = H * Dp
    TQ = q_ref.shape[0]
    qi = pl.program_id(1)

    # ---- K/V projection: once per batch (query axis is the inner,
    # "arbitrary" grid axis, so kv_ref persists across query tiles). --------
    @pl.when(qi == 0)
    def _():
        x_full = x_ref[0]                                              # (N, E) bf16
        kv = jnp.dot(x_full, wkv_ref[...],
                     preferred_element_type=jnp.float32) + bkv_ref[...]  # (N, 2*HDp) f32
        kv_ref[0] = kv[:, :HDp].astype(jnp.bfloat16)                   # K
        kv_ref[1] = kv[:, HDp:].astype(jnp.bfloat16)                   # V

    # ---- Q projection for this query tile (1/sqrt(D) already folded). -----
    q_start = pl.multiple_of(qi * TQ, TQ)
    x_q = x_ref[0, pl.ds(q_start, TQ), :]                              # (TQ, E) bf16
    q = jnp.dot(x_q, wq_ref[...],
                preferred_element_type=jnp.float32) + bq_ref[...]      # (TQ, HDp) f32
    q_ref[...] = q.astype(jnp.bfloat16)

    # ---- Per-head attention, accumulated straight into (TQ, E) scratch. ---
    acc_ref[...] = jnp.zeros_like(acc_ref)
    for h in range(H):
        lo = h * Dp
        qh = q_ref[:, pl.ds(lo, Dp)]                                   # (TQ, Dp) bf16
        kh = kv_ref[0, :, pl.ds(lo, Dp)]                               # (N,  Dp) bf16
        vh = kv_ref[1, :, pl.ds(lo, Dp)]                               # (N,  Dp) bf16

        # scores (scale pre-folded into Wq/bq); softmax kept in f32.
        s = jax.lax.dot_general(qh, kh, (((1,), (1,)), ((), ())),
                                preferred_element_type=jnp.float32)    # (TQ, N)
        s = s - jnp.max(s, axis=-1, keepdims=True)
        p = jnp.exp(s)
        p = p * pl.reciprocal(jnp.sum(p, axis=-1, keepdims=True), approx=True)

        hv = jnp.dot(p.astype(jnp.bfloat16), vh,
                     preferred_element_type=jnp.float32)               # (TQ, Dp)
        # Fold this head's contribution through its (zero-padded) proj slice.
        acc_ref[...] += jnp.dot(hv.astype(jnp.bfloat16),
                                wp_ref[pl.ds(lo, Dp), :],
                                preferred_element_type=jnp.float32)    # (TQ, E)

    o_ref[0] = acc_ref[...] + bp_ref[...]

    # TODO(synk): nn.Dropout(0.1) is identity in eval mode; training-mode
    # stochastic dropout is intentionally not reproduced here.
    # TODO(synk): for very long sequences (N >= ~4k on v7x), add key-tile
    # online-softmax (flash-style) so the live score tile is TQ x TK instead
    # of TQ x N and the per-batch K/V scratch can also be key-tiled.


def _vmem_bytes_estimate(tq, n, e, hdp):
    """Rough live-VMEM footprint for one grid step (bytes)."""
    x_blk = 2 * n * e * 2                                  # double-buffered bf16 x block
    out_blk = 2 * tq * e * 4                               # double-buffered f32 out block
    weights = 2 * ((e * hdp + e * 2 * hdp + hdp * e) * 2   # bf16 weights (double-buffered)
                   + (hdp + 2 * hdp + e) * 4)              # f32 biases
    scratch = 2 * n * hdp * 2 + tq * hdp * 2 + tq * e * 4  # kv / q / acc scratches
    temporaries = (n * 2 * hdp * 4 + tq * hdp * 4          # f32 kv / q results
                   + 2 * tq * n * 4 + tq * hdp * 4         # one head's score tiles + output
                   + tq * e * 4)
    return x_blk + out_blk + weights + scratch + temporaries


def _pick_q_tile(n, e, hdp, vmem_cap):
    """Largest MXU-friendly query tile that divides N and fits the VMEM budget."""
    for t in (1024, 512, 256, 128):
        if n % t == 0 and _vmem_bytes_estimate(t, n, e, hdp) < 0.6 * vmem_cap:
            return t
    # TODO(synk): for large N not divisible by 128 this falls back to a single
    # huge tile; a padded/ragged query axis would be needed for such shapes.
    return n


def msa_pallas(x, wq_p, bq_p, wkv_p, bkv_p, wp_p, bp_p, n_heads):
    """x: (B,N,E) f32/bf16.
    wq_p: (E,H*Dp) bf16 (scale folded), bq_p: (1,H*Dp) f32 (scale folded),
    wkv_p: (E,2*H*Dp) bf16, bkv_p: (1,2*H*Dp) f32,
    wp_p: (H*Dp,E) bf16, bp_p: (1,E) f32."""
    B, N, E = x.shape
    HDp = wq_p.shape[1]
    Dp = HDp // n_heads

    # Generation-aware VMEM budget (v7x: 64 MiB/TC, v5e/v6e: 128 MiB).
    try:
        vmem_cap = int(pltpu.get_tpu_info().vmem_capacity_bytes)
    except Exception:
        vmem_cap = 64 * 1024 * 1024          # conservative fallback (v7x per-TC)

    TQ = _pick_q_tile(N, E, HDp, vmem_cap)
    est = _vmem_bytes_estimate(TQ, N, E, HDp)
    vmem_limit = int(min(int(vmem_cap * 0.85),          # always leave headroom
                         max(32 * 1024 * 1024, 2 * est)))

    # Advisory cost estimate: QKV projections + attention + proj_back.
    flops = int(B * (2 * N * E * 3 * HDp       # fused Q / K / V projections
                     + 4 * N * N * HDp         # scores + P@V over all heads
                     + 2 * N * HDp * E))       # proj_back
    transcendentals = int(B * n_heads * N * N)
    bytes_accessed = int(B * N * E * 2                                 # x (bf16)
                         + (E * 3 * HDp + HDp * E) * 2                 # bf16 weights
                         + (3 * HDp + E) * 4                           # f32 biases
                         + B * N * E * 4)                              # out (f32)
    cost = pl.CostEstimate(flops=flops, transcendentals=transcendentals,
                           bytes_accessed=bytes_accessed)

    kernel = functools.partial(_msa_kernel, n_heads=n_heads, dp=Dp)

    grid_spec = pltpu.PrefetchScalarGridSpec(
        num_scalar_prefetch=0,
        grid=(B, N // TQ),
        in_specs=[
            pl.BlockSpec((1, N, E), lambda b, qi: (b, 0, 0)),        # x (full seq, bf16)
            pl.BlockSpec((E, HDp), lambda b, qi: (0, 0)),            # Wq packed (scaled)
            pl.BlockSpec((1, HDp), lambda b, qi: (0, 0)),            # bq packed (scaled)
            pl.BlockSpec((E, 2 * HDp), lambda b, qi: (0, 0)),        # Wkv packed
            pl.BlockSpec((1, 2 * HDp), lambda b, qi: (0, 0)),        # bkv packed
            pl.BlockSpec((HDp, E), lambda b, qi: (0, 0)),            # Wp (padded rows)
            pl.BlockSpec((1, E), lambda b, qi: (0, 0)),              # bp
        ],
        out_specs=pl.BlockSpec((1, TQ, E), lambda b, qi: (b, qi, 0)),
        scratch_shapes=[
            pltpu.VMEM((2, N, HDp), jnp.bfloat16),   # K / V, persistent per batch
            pltpu.VMEM((TQ, HDp), jnp.bfloat16),     # Q tile
            pltpu.VMEM((TQ, E), jnp.float32),        # attention + proj accumulator
        ],
    )

    # Batch axis is megacore-shardable; the query axis carries the per-batch
    # K/V scratch so it must stay "arbitrary" (sequential on one core).
    # TODO(synk): for B=1 workloads on v7x, prefer sharding the query axis
    # across the two TCs and recomputing K/V per core instead.
    return pl.pallas_call(
        kernel,
        out_shape=jax.ShapeDtypeStruct((B, N, E), jnp.float32),
        grid_spec=grid_spec,
        compiler_params=pltpu.CompilerParams(
            dimension_semantics=("parallel", "arbitrary"),
            vmem_limit_bytes=vmem_limit),
        cost_estimate=cost,
    )(x.astype(jnp.bfloat16), wq_p, bq_p, wkv_p, bkv_p, wp_p, bp_p)


def msa_reference(x, qkv_weights, qkv_biases, wp, bp):
    """Pure-JAX mirror of the PyTorch forward (eval mode), including the
    view(B,N,emb//3,3) + unbind(-1) interleaving of the per-head qkv output."""
    B, N, E = x.shape
    heads = []
    for W, b in zip(qkv_weights, qkv_biases):
        out = x @ W.T + b                         # (B, N, 3*D)
        D = out.shape[-1] // 3
        out = out.reshape(B, N, D, 3)
        Q, K, V = out[..., 0], out[..., 1], out[..., 2]
        wei = Q @ jnp.swapaxes(K, -2, -1)
        wei = wei / math.sqrt(D)
        wei = jax.nn.softmax(wei, axis=-1)
        heads.append(wei @ V)
    cat = jnp.concatenate(heads, axis=-1)         # (B, N, H*D)
    return cat @ wp.T + bp                        # dropout = identity (eval)


if __name__ == "__main__":
    # Small shapes consistent with the module.
    B, N, E, H = 2, 8, 32, 4
    D = E // H

    key = jax.random.PRNGKey(0)
    keys = jax.random.split(key, 2 * H + 3)

    # Per-head qkv Linear(E, 3*D): weight (3D, E), bias (3D,).
    qkv_weights, qkv_biases = [], []
    bound_qkv = 1.0 / math.sqrt(E)
    for h in range(H):
        w = jax.random.uniform(keys[2 * h], (3 * D, E), jnp.float32,
                               -bound_qkv, bound_qkv)
        b = jax.random.uniform(keys[2 * h + 1], (3 * D,), jnp.float32,
                               -bound_qkv, bound_qkv)
        qkv_weights.append(w)
        qkv_biases.append(b)

    # proj_back Linear(H*D, E): weight (E, H*D), bias (E,)
    bound_p = 1.0 / math.sqrt(H * D)
    wp = jax.random.uniform(keys[2 * H], (E, H * D), jnp.float32, -bound_p, bound_p)
    bp = jax.random.uniform(keys[2 * H + 1], (E,), jnp.float32, -bound_p, bound_p)

    x = jax.random.normal(keys[2 * H + 2], (B, N, E), jnp.float32)

    # --- glue: de-interleave the per-head qkv rows (0::3->Q, 1::3->K, 2::3->V),
    # pad each head's columns to a lane-aligned width Dp, pack all heads into
    # lane-dense fused matrices, fold 1/sqrt(D) into Wq/bq, pre-cast to bf16.
    Dp = D if D % 128 == 0 else ((D // 128) + 1) * 128
    scale = 1.0 / math.sqrt(D)

    def pad_w(w_t):          # (E, D) -> (E, Dp), zero-padded lanes
        return jnp.pad(w_t, ((0, 0), (0, Dp - D)))

    def pad_b(b_vec):        # (D,) -> (Dp,)
        return jnp.pad(b_vec, (0, Dp - D))

    wq_cols, wk_cols, wv_cols = [], [], []
    bq_cols, bk_cols, bv_cols = [], [], []
    for w, b in zip(qkv_weights, qkv_biases):
        wq_cols.append(pad_w(w[0::3, :].T)); bq_cols.append(pad_b(b[0::3]))
        wk_cols.append(pad_w(w[1::3, :].T)); bk_cols.append(pad_b(b[1::3]))
        wv_cols.append(pad_w(w[2::3, :].T)); bv_cols.append(pad_b(b[2::3]))

    wq_p = (jnp.concatenate(wq_cols, axis=1) * scale).astype(jnp.bfloat16)   # (E, H*Dp)
    bq_p = (jnp.concatenate(bq_cols) * scale)[None, :]                       # (1, H*Dp) f32
    wkv_p = jnp.concatenate(
        [jnp.concatenate(wk_cols, axis=1),
         jnp.concatenate(wv_cols, axis=1)], axis=1).astype(jnp.bfloat16)     # (E, 2*H*Dp)
    bkv_p = jnp.concatenate(
        [jnp.concatenate(bk_cols), jnp.concatenate(bv_cols)])[None, :]       # (1, 2*H*Dp) f32

    wp_rows = [jnp.pad(wp[:, h * D:(h + 1) * D].T, ((0, Dp - D), (0, 0)))
               for h in range(H)]
    wp_p = jnp.concatenate(wp_rows, axis=0).astype(jnp.bfloat16)             # (H*Dp, E)
    bp_p = bp[None, :]                                                       # (1, E) f32

    out = msa_pallas(x, wq_p, bq_p, wkv_p, bkv_p, wp_p, bp_p, H)
    out = jax.block_until_ready(out)

    ref = msa_reference(x, qkv_weights, qkv_biases, wp, bp)
    assert out.shape == (B, N, E)
    # bf16 streamed x, bf16 MXU operands + approximate reciprocal => compare
    # with a bf16-level tolerance.
    assert jnp.allclose(out, ref, atol=5e-2, rtol=5e-2), (
        "mismatch vs reference: max abs diff = "
        f"{float(jnp.max(jnp.abs(out - ref)))}")

    print("KERNEL_OK")
</pallas_src>

<mosaic_0001>
module attributes {stable_mosaic.version = 11 : i64} {
  func.func @_msa_kernel(%arg0: i32, %arg1: i32, %arg2: memref<1x8x32xbf16, #tpu.memory_space<vmem>>, %arg3: memref<32x512xbf16, #tpu.memory_space<vmem>>, %arg4: memref<1x512xf32, #tpu.memory_space<vmem>>, %arg5: memref<32x1024xbf16, #tpu.memory_space<vmem>>, %arg6: memref<1x1024xf32, #tpu.memory_space<vmem>>, %arg7: memref<512x32xbf16, #tpu.memory_space<vmem>>, %arg8: memref<1x32xf32, #tpu.memory_space<vmem>>, %arg9: memref<1x8x32xf32, #tpu.memory_space<vmem>>, %arg10: memref<2x8x512xbf16, #tpu.memory_space<vmem>>, %arg11: memref<8x512xbf16, #tpu.memory_space<vmem>>, %arg12: memref<8x32xf32, #tpu.memory_space<vmem>>) attributes {dimension_semantics = [#tpu.dimension_semantics<parallel>, #tpu.dimension_semantics<arbitrary>], iteration_bounds = array<i64: 2, 1>, scalar_prefetch = 0 : i64, scratch_operands = 3 : i64, tpu.core_type = #tpu.core_type<tc>, window_params = [{transform_indices = @transform_0, window_bounds = array<i64: 1, 8, 32>}, {pipeline_mode = #tpu.pipeline_mode<synchronous>, transform_indices = @transform_1, window_bounds = array<i64: 32, 512>}, {pipeline_mode = #tpu.pipeline_mode<synchronous>, transform_indices = @transform_2, window_bounds = array<i64: 1, 512>}, {pipeline_mode = #tpu.pipeline_mode<synchronous>, transform_indices = @transform_3, window_bounds = array<i64: 32, 1024>}, {pipeline_mode = #tpu.pipeline_mode<synchronous>, transform_indices = @transform_4, window_bounds = array<i64: 1, 1024>}, {pipeline_mode = #tpu.pipeline_mode<synchronous>, transform_indices = @transform_5, window_bounds = array<i64: 512, 32>}, {pipeline_mode = #tpu.pipeline_mode<synchronous>, transform_indices = @transform_6, window_bounds = array<i64: 1, 32>}, {transform_indices = @transform_7, window_bounds = array<i64: 1, 8, 32>}]} {
    %c0_i32 = arith.constant 0 : i32
    %0 = arith.cmpi eq, %arg1, %c0_i32 : i32
    %1 = arith.extui %0 : i1 to i32
    %c0_i32_0 = arith.constant 0 : i32
    %2 = arith.cmpi ne, %1, %c0_i32_0 : i32
    scf.if %2 {
      %c0_90 = arith.constant 0 : index
      %c0_91 = arith.constant 0 : index
      %c0_92 = arith.constant 0 : index
      %120 = vector.load %arg2[%c0_90, %c0_91, %c0_92] : memref<1x8x32xbf16, #tpu.memory_space<vmem>>, vector<1x8x32xbf16>
      %121 = vector.shape_cast %120 : vector<1x8x32xbf16> to vector<8x32xbf16>
      %c0_93 = arith.constant 0 : index
      %c0_94 = arith.constant 0 : index
      %122 = vector.load %arg5[%c0_93, %c0_94] : memref<32x1024xbf16, #tpu.memory_space<vmem>>, vector<32x1024xbf16>
      %cst_95 = arith.constant dense<0.000000e+00> : vector<8x1024xf32>
      %123 = tpu.matmul %121, %122, %cst_95 {dimension_numbers = #tpu.dot_dimension_numbers<[1], [0], [0], [1], [0, 0, 1, 1], [], []>} : vector<8x32xbf16>, vector<32x1024xbf16>, vector<8x1024xf32> -> vector<8x1024xf32>
      %c0_96 = arith.constant 0 : index
      %c0_97 = arith.constant 0 : index
      %124 = vector.load %arg6[%c0_96, %c0_97] : memref<1x1024xf32, #tpu.memory_space<vmem>>, vector<1x1024xf32>
      %125 = vector.broadcast %124 : vector<1x1024xf32> to vector<8x1024xf32>
      %126 = arith.addf %123, %125 : vector<8x1024xf32>
      %127 = vector.extract_strided_slice %126 {offsets = [0, 0], sizes = [8, 512], strides = [1, 1]} : vector<8x1024xf32> to vector<8x512xf32>
      %128 = arith.truncf %127 : vector<8x512xf32> to vector<8x512xbf16>
      %c0_98 = arith.constant 0 : index
      %c0_99 = arith.constant 0 : index
      %c0_100 = arith.constant 0 : index
      %129 = vector.load %arg10[%c0_98, %c0_99, %c0_100] : memref<2x8x512xbf16, #tpu.memory_space<vmem>>, vector<1x8x512xbf16>
      %130 = vector.shape_cast %129 : vector<1x8x512xbf16> to vector<8x512xbf16>
      %131 = vector.shape_cast %128 : vector<8x512xbf16> to vector<1x8x512xbf16>
      tpu.vector_store %arg10[%c0_98, %c0_99, %c0_100], %131 {strides = array<i32>} : memref<2x8x512xbf16, #tpu.memory_space<vmem>>, vector<1x8x512xbf16>,
      %132 = vector.extract_strided_slice %126 {offsets = [0, 512], sizes = [8, 512], strides = [1, 1]} : vector<8x1024xf32> to vector<8x512xf32>
      %133 = arith.truncf %132 : vector<8x512xf32> to vector<8x512xbf16>
      %c1_101 = arith.constant 1 : index
      %c0_102 = arith.constant 0 : index
      %c0_103 = arith.constant 0 : index
      %134 = vector.load %arg10[%c1_101, %c0_102, %c0_103] : memref<2x8x512xbf16, #tpu.memory_space<vmem>>, vector<1x8x512xbf16>
      %135 = vector.shape_cast %134 : vector<1x8x512xbf16> to vector<8x512xbf16>
      %136 = vector.shape_cast %133 : vector<8x512xbf16> to vector<1x8x512xbf16>
      tpu.vector_store %arg10[%c1_101, %c0_102, %c0_103], %136 {strides = array<i32>} : memref<2x8x512xbf16, #tpu.memory_space<vmem>>, vector<1x8x512xbf16>,
    } else {
    }
    %c8_i32 = arith.constant 8 : i32
    %3 = arith.muli %arg1, %c8_i32 : i32
    %4 = tpu.assume_multiple %3, 8 : i32
    %c0 = arith.constant 0 : index
    %5 = arith.index_cast %4 : i32 to index
    %c0_1 = arith.constant 0 : index
    %6 = vector.load %arg2[%c0, %5, %c0_1] : memref<1x8x32xbf16, #tpu.memory_space<vmem>>, vector<1x8x32xbf16>
    %7 = vector.shape_cast %6 : vector<1x8x32xbf16> to vector<8x32xbf16>
    %c0_2 = arith.constant 0 : index
    %c0_3 = arith.constant 0 : index
    %8 = vector.load %arg3[%c0_2, %c0_3] : memref<32x512xbf16, #tpu.memory_space<vmem>>, vector<32x512xbf16>
    %cst = arith.constant dense<0.000000e+00> : vector<8x512xf32>
    %9 = tpu.matmul %7, %8, %cst {dimension_numbers = #tpu.dot_dimension_numbers<[1], [0], [0], [1], [0, 0, 1, 1], [], []>} : vector<8x32xbf16>, vector<32x512xbf16>, vector<8x512xf32> -> vector<8x512xf32>
    %c0_4 = arith.constant 0 : index
    %c0_5 = arith.constant 0 : index
    %10 = vector.load %arg4[%c0_4, %c0_5] : memref<1x512xf32, #tpu.memory_space<vmem>>, vector<1x512xf32>
    %11 = vector.broadcast %10 : vector<1x512xf32> to vector<8x512xf32>
    %12 = arith.addf %9, %11 : vector<8x512xf32>
    %13 = arith.truncf %12 : vector<8x512xf32> to vector<8x512xbf16>
    %c0_6 = arith.constant 0 : index
    %c0_7 = arith.constant 0 : index
    %14 = vector.load %arg11[%c0_6, %c0_7] : memref<8x512xbf16, #tpu.memory_space<vmem>>, vector<8x512xbf16>
    tpu.vector_store %arg11[%c0_6, %c0_7], %13 {strides = array<i32>} : memref<8x512xbf16, #tpu.memory_space<vmem>>, vector<8x512xbf16>,
    %cst_8 = arith.constant 0.000000e+00 : f32
    %15 = vector.broadcast %cst_8 : f32 to vector<8x32xf32>
    %c0_9 = arith.constant 0 : index
    %c0_10 = arith.constant 0 : index
    %16 = vector.load %arg12[%c0_9, %c0_10] : memref<8x32xf32, #tpu.memory_space<vmem>>, vector<8x32xf32>
    tpu.vector_store %arg12[%c0_9, %c0_10], %15 {strides = array<i32>} : memref<8x32xf32, #tpu.memory_space<vmem>>, vector<8x32xf32>,
    %c0_11 = arith.constant 0 : index
    %c0_12 = arith.constant 0 : index
    %17 = vector.load %arg11[%c0_11, %c0_12] : memref<8x512xbf16, #tpu.memory_space<vmem>>, vector<8x128xbf16>
    %c0_13 = arith.constant 0 : index
    %c0_14 = arith.constant 0 : index
    %c0_15 = arith.constant 0 : index
    %18 = vector.load %arg10[%c0_13, %c0_14, %c0_15] : memref<2x8x512xbf16, #tpu.memory_space<vmem>>, vector<1x8x128xbf16>
    %19 = vector.shape_cast %18 : vector<1x8x128xbf16> to vector<8x128xbf16>
    %c1 = arith.constant 1 : index
    %c0_16 = arith.constant 0 : index
    %c0_17 = arith.constant 0 : index
    %20 = vector.load %arg10[%c1, %c0_16, %c0_17] : memref<2x8x512xbf16, #tpu.memory_space<vmem>>, vector<1x8x128xbf16>
    %21 = vector.shape_cast %20 : vector<1x8x128xbf16> to vector<8x128xbf16>
    %cst_18 = arith.constant dense<0.000000e+00> : vector<8x8xf32>
    %22 = tpu.matmul %17, %19, %cst_18 {dimension_numbers = #tpu.dot_dimension_numbers<[1], [1], [0], [0], [0, 0, 1, 0], [], []>} : vector<8x128xbf16>, vector<8x128xbf16>, vector<8x8xf32> -> vector<8x8xf32>
    %cst_19 = arith.constant dense<0xFF800000> : vector<8xf32>
    %23 = vector.multi_reduction <maximumf>, %22, %cst_19 [1] : vector<8x8xf32> to vector<8xf32>
    %24 = vector.shape_cast %23 : vector<8xf32> to vector<8x1xf32>
    %25 = vector.broadcast %24 : vector<8x1xf32> to vector<8x8xf32>
    %26 = arith.subf %22, %25 : vector<8x8xf32>
    %27 = math.exp %26 : vector<8x8xf32>
    %cst_20 = arith.constant dense<0.000000e+00> : vector<8xf32>
    %28 = vector.multi_reduction <add>, %27, %cst_20 [1] : vector<8x8xf32> to vector<8xf32>
    %29 = vector.shape_cast %28 : vector<8xf32> to vector<8x1xf32>
    %30 = tpu.reciprocal %29 {approx = true} : vector<8x1xf32> -> vector<8x1xf32>
    %31 = vector.broadcast %30 : vector<8x1xf32> to vector<8x8xf32>
    %32 = arith.mulf %27, %31 : vector<8x8xf32>
    %33 = arith.truncf %32 : vector<8x8xf32> to vector<8x8xbf16>
    %cst_21 = arith.constant dense<0.000000e+00> : vector<8x128xf32>
    %34 = tpu.matmul %33, %21, %cst_21 {dimension_numbers = #tpu.dot_dimension_numbers<[1], [0], [0], [1], [0, 0, 1, 1], [], []>} : vector<8x8xbf16>, vector<8x128xbf16>, vector<8x128xf32> -> vector<8x128xf32>
    %c0_22 = arith.constant 0 : index
    %c0_23 = arith.constant 0 : index
    %35 = vector.load %arg12[%c0_22, %c0_23] : memref<8x32xf32, #tpu.memory_space<vmem>>, vector<8x32xf32>
    %36 = arith.truncf %34 : vector<8x128xf32> to vector<8x128xbf16>
    %c0_24 = arith.constant 0 : index
    %c0_25 = arith.constant 0 : index
    %37 = vector.load %arg7[%c0_24, %c0_25] : memref<512x32xbf16, #tpu.memory_space<vmem>>, vector<128x32xbf16>
    %cst_26 = arith.constant dense<0.000000e+00> : vector<8x32xf32>
    %38 = tpu.matmul %36, %37, %cst_26 {dimension_numbers = #tpu.dot_dimension_numbers<[1], [0], [0], [1], [0, 0, 1, 1], [], []>} : vector<8x128xbf16>, vector<128x32xbf16>, vector<8x32xf32> -> vector<8x32xf32>
    %39 = arith.addf %35, %38 : vector<8x32xf32>
    %c0_27 = arith.constant 0 : index
    %c0_28 = arith.constant 0 : index
    %40 = vector.load %arg12[%c0_27, %c0_28] : memref<8x32xf32, #tpu.memory_space<vmem>>, vector<8x32xf32>
    tpu.vector_store %arg12[%c0_27, %c0_28], %39 {strides = array<i32>} : memref<8x32xf32, #tpu.memory_space<vmem>>, vector<8x32xf32>,
    %c0_29 = arith.constant 0 : index
    %c128 = arith.constant 128 : index
    %41 = vector.load %arg11[%c0_29, %c128] : memref<8x512xbf16, #tpu.memory_space<vmem>>, vector<8x128xbf16>
    %c0_30 = arith.constant 0 : index
    %c0_31 = arith.constant 0 : index
    %c128_32 = arith.constant 128 : index
    %42 = vector.load %arg10[%c0_30, %c0_31, %c128_32] : memref<2x8x512xbf16, #tpu.memory_space<vmem>>, vector<1x8x128xbf16>
    %43 = vector.shape_cast %42 : vector<1x8x128xbf16> to vector<8x128xbf16>
    %c1_33 = arith.constant 1 : index
    %c0_34 = arith.constant 0 : index
    %c128_35 = arith.constant 128 : index
    %44 = vector.load %arg10[%c1_33, %c0_34, %c128_35] : memref<2x8x512xbf16, #tpu.memory_space<vmem>>, vector<1x8x128xbf16>
    %45 = vector.shape_cast %44 : vector<1x8x128xbf16> to vector<8x128xbf16>
    %cst_36 = arith.constant dense<0.000000e+00> : vector<8x8xf32>
    %46 = tpu.matmul %41, %43, %cst_36 {dimension_numbers = #tpu.dot_dimension_numbers<[1], [1], [0], [0], [0, 0, 1, 0], [], []>} : vector<8x128xbf16>, vector<8x128xbf16>, vector<8x8xf32> -> vector<8x8xf32>
    %cst_37 = arith.constant dense<0xFF800000> : vector<8xf32>
    %47 = vector.multi_reduction <maximumf>, %46, %cst_37 [1] : vector<8x8xf32> to vector<8xf32>
    %48 = vector.shape_cast %47 : vector<8xf32> to vector<8x1xf32>
    %49 = vector.broadcast %48 : vector<8x1xf32> to vector<8x8xf32>
    %50 = arith.subf %46, %49 : vector<8x8xf32>
    %51 = math.exp %50 : vector<8x8xf32>
    %cst_38 = arith.constant dense<0.000000e+00> : vector<8xf32>
    %52 = vector.multi_reduction <add>, %51, %cst_38 [1] : vector<8x8xf32> to vector<8xf32>
    %53 = vector.shape_cast %52 : vector<8xf32> to vector<8x1xf32>
    %54 = tpu.reciprocal %53 {approx = true} : vector<8x1xf32> -> vector<8x1xf32>
    %55 = vector.broadcast %54 : vector<8x1xf32> to vector<8x8xf32>
    %56 = arith.mulf %51, %55 : vector<8x8xf32>
    %57 = arith.truncf %56 : vector<8x8xf32> to vector<8x8xbf16>
    %cst_39 = arith.constant dense<0.000000e+00> : vector<8x128xf32>
    %58 = tpu.matmul %57, %45, %cst_39 {dimension_numbers = #tpu.dot_dimension_numbers<[1], [0], [0], [1], [0, 0, 1, 1], [], []>} : vector<8x8xbf16>, vector<8x128xbf16>, vector<8x128xf32> -> vector<8x128xf32>
    %c0_40 = arith.constant 0 : index
    %c0_41 = arith.constant 0 : index
    %59 = vector.load %arg12[%c0_40, %c0_41] : memref<8x32xf32, #tpu.memory_space<vmem>>, vector<8x32xf32>
    %60 = arith.truncf %58 : vector<8x128xf32> to vector<8x128xbf16>
    %c128_42 = arith.constant 128 : index
    %c0_43 = arith.constant 0 : index
    %61 = vector.load %arg7[%c128_42, %c0_43] : memref<512x32xbf16, #tpu.memory_space<vmem>>, vector<128x32xbf16>
    %cst_44 = arith.constant dense<0.000000e+00> : vector<8x32xf32>
    %62 = tpu.matmul %60, %61, %cst_44 {dimension_numbers = #tpu.dot_dimension_numbers<[1], [0], [0], [1], [0, 0, 1, 1], [], []>} : vector<8x128xbf16>, vector<128x32xbf16>, vector<8x32xf32> -> vector<8x32xf32>
    %63 = arith.addf %59, %62 : vector<8x32xf32>
    %c0_45 = arith.constant 0 : index
    %c0_46 = arith.constant 0 : index
    %64 = vector.load %arg12[%c0_45, %c0_46] : memref<8x32xf32, #tpu.memory_space<vmem>>, vector<8x32xf32>
    tpu.vector_store %arg12[%c0_45, %c0_46], %63 {strides = array<i32>} : memref<8x32xf32, #tpu.memory_space<vmem>>, vector<8x32xf32>,
    %c0_47 = arith.constant 0 : index
    %c256 = arith.constant 256 : index
    %65 = vector.load %arg11[%c0_47, %c256] : memref<8x512xbf16, #tpu.memory_space<vmem>>, vector<8x128xbf16>
    %c0_48 = arith.constant 0 : index
    %c0_49 = arith.constant 0 : index
    %c256_50 = arith.constant 256 : index
    %66 = vector.load %arg10[%c0_48, %c0_49, %c256_50] : memref<2x8x512xbf16, #tpu.memory_space<vmem>>, vector<1x8x128xbf16>
    %67 = vector.shape_cast %66 : vector<1x8x128xbf16> to vector<8x128xbf16>
    %c1_51 = arith.constant 1 : index
    %c0_52 = arith.constant 0 : index
    %c256_53 = arith.constant 256 : index
    %68 = vector.load %arg10[%c1_51, %c0_52, %c256_53] : memref<2x8x512xbf16, #tpu.memory_space<vmem>>, vector<1x8x128xbf16>
    %69 = vector.shape_cast %68 : vector<1x8x128xbf16> to vector<8x128xbf16>
    %cst_54 = arith.constant dense<0.000000e+00> : vector<8x8xf32>
    %70 = tpu.matmul %65, %67, %cst_54 {dimension_numbers = #tpu.dot_dimension_numbers<[1], [1], [0], [0], [0, 0, 1, 0], [], []>} : vector<8x128xbf16>, vector<8x128xbf16>, vector<8x8xf32> -> vector<8x8xf32>
    %cst_55 = arith.constant dense<0xFF800000> : vector<8xf32>
    %71 = vector.multi_reduction <maximumf>, %70, %cst_55 [1] : vector<8x8xf32> to vector<8xf32>
    %72 = vector.shape_cast %71 : vector<8xf32> to vector<8x1xf32>
    %73 = vector.broadcast %72 : vector<8x1xf32> to vector<8x8xf32>
    %74 = arith.subf %70, %73 : vector<8x8xf32>
    %75 = math.exp %74 : vector<8x8xf32>
    %cst_56 = arith.constant dense<0.000000e+00> : vector<8xf32>
    %76 = vector.multi_reduction <add>, %75, %cst_56 [1] : vector<8x8xf32> to vector<8xf32>
    %77 = vector.shape_cast %76 : vector<8xf32> to vector<8x1xf32>
    %78 = tpu.reciprocal %77 {approx = true} : vector<8x1xf32> -> vector<8x1xf32>
    %79 = vector.broadcast %78 : vector<8x1xf32> to vector<8x8xf32>
    %80 = arith.mulf %75, %79 : vector<8x8xf32>
    %81 = arith.truncf %80 : vector<8x8xf32> to vector<8x8xbf16>
    %cst_57 = arith.constant dense<0.000000e+00> : vector<8x128xf32>
    %82 = tpu.matmul %81, %69, %cst_57 {dimension_numbers = #tpu.dot_dimension_numbers<[1], [0], [0], [1], [0, 0, 1, 1], [], []>} : vector<8x8xbf16>, vector<8x128xbf16>, vector<8x128xf32> -> vector<8x128xf32>
    %c0_58 = arith.constant 0 : index
    %c0_59 = arith.constant 0 : index
    %83 = vector.load %arg12[%c0_58, %c0_59] : memref<8x32xf32, #tpu.memory_space<vmem>>, vector<8x32xf32>
    %84 = arith.truncf %82 : vector<8x128xf32> to vector<8x128xbf16>
    %c256_60 = arith.constant 256 : index
    %c0_61 = arith.constant 0 : index
    %85 = vector.load %arg7[%c256_60, %c0_61] : memref<512x32xbf16, #tpu.memory_space<vmem>>, vector<128x32xbf16>
    %cst_62 = arith.constant dense<0.000000e+00> : vector<8x32xf32>
    %86 = tpu.matmul %84, %85, %cst_62 {dimension_numbers = #tpu.dot_dimension_numbers<[1], [0], [0], [1], [0, 0, 1, 1], [], []>} : vector<8x128xbf16>, vector<128x32xbf16>, vector<8x32xf32> -> vector<8x32xf32>
    %87 = arith.addf %83, %86 : vector<8x32xf32>
    %c0_63 = arith.constant 0 : index
    %c0_64 = arith.constant 0 : index
    %88 = vector.load %arg12[%c0_63, %c0_64] : memref<8x32xf32, #tpu.memory_space<vmem>>, vector<8x32xf32>
    tpu.vector_store %arg12[%c0_63, %c0_64], %87 {strides = array<i32>} : memref<8x32xf32, #tpu.memory_space<vmem>>, vector<8x32xf32>,
    %c0_65 = arith.constant 0 : index
    %c384 = arith.constant 384 : index
    %89 = vector.load %arg11[%c0_65, %c384] : memref<8x512xbf16, #tpu.memory_space<vmem>>, vector<8x128xbf16>
    %c0_66 = arith.constant 0 : index
    %c0_67 = arith.constant 0 : index
    %c384_68 = arith.constant 384 : index
    %90 = vector.load %arg10[%c0_66, %c0_67, %c384_68] : memref<2x8x512xbf16, #tpu.memory_space<vmem>>, vector<1x8x128xbf16>
    %91 = vector.shape_cast %90 : vector<1x8x128xbf16> to vector<8x128xbf16>
    %c1_69 = arith.constant 1 : index
    %c0_70 = arith.constant 0 : index
    %c384_71 = arith.constant 384 : index
    %92 = vector.load %arg10[%c1_69, %c0_70, %c384_71] : memref<2x8x512xbf16, #tpu.memory_space<vmem>>, vector<1x8x128xbf16>
    %93 = vector.shape_cast %92 : vector<1x8x128xbf16> to vector<8x128xbf16>
    %cst_72 = arith.constant dense<0.000000e+00> : vector<8x8xf32>
    %94 = tpu.matmul %89, %91, %cst_72 {dimension_numbers = #tpu.dot_dimension_numbers<[1], [1], [0], [0], [0, 0, 1, 0], [], []>} : vector<8x128xbf16>, vector<8x128xbf16>, vector<8x8xf32> -> vector<8x8xf32>
    %cst_73 = arith.constant dense<0xFF800000> : vector<8xf32>
    %95 = vector.multi_reduction <maximumf>, %94, %cst_73 [1] : vector<8x8xf32> to vector<8xf32>
    %96 = vector.shape_cast %95 : vector<8xf32> to vector<8x1xf32>
    %97 = vector.broadcast %96 : vector<8x1xf32> to vector<8x8xf32>
    %98 = arith.subf %94, %97 : vector<8x8xf32>
    %99 = math.exp %98 : vector<8x8xf32>
    %cst_74 = arith.constant dense<0.000000e+00> : vector<8xf32>
    %100 = vector.multi_reduction <add>, %99, %cst_74 [1] : vector<8x8xf32> to vector<8xf32>
    %101 = vector.shape_cast %100 : vector<8xf32> to vector<8x1xf32>
    %102 = tpu.reciprocal %101 {approx = true} : vector<8x1xf32> -> vector<8x1xf32>
    %103 = vector.broadcast %102 : vector<8x1xf32> to vector<8x8xf32>
    %104 = arith.mulf %99, %103 : vector<8x8xf32>
    %105 = arith.truncf %104 : vector<8x8xf32> to vector<8x8xbf16>
    %cst_75 = arith.constant dense<0.000000e+00> : vector<8x128xf32>
    %106 = tpu.matmul %105, %93, %cst_75 {dimension_numbers = #tpu.dot_dimension_numbers<[1], [0], [0], [1], [0, 0, 1, 1], [], []>} : vector<8x8xbf16>, vector<8x128xbf16>, vector<8x128xf32> -> vector<8x128xf32>
    %c0_76 = arith.constant 0 : index
    %c0_77 = arith.constant 0 : index
    %107 = vector.load %arg12[%c0_76, %c0_77] : memref<8x32xf32, #tpu.memory_space<vmem>>, vector<8x32xf32>
    %108 = arith.truncf %106 : vector<8x128xf32> to vector<8x128xbf16>
    %c384_78 = arith.constant 384 : index
    %c0_79 = arith.constant 0 : index
    %109 = vector.load %arg7[%c384_78, %c0_79] : memref<512x32xbf16, #tpu.memory_space<vmem>>, vector<128x32xbf16>
    %cst_80 = arith.constant dense<0.000000e+00> : vector<8x32xf32>
    %110 = tpu.matmul %108, %109, %cst_80 {dimension_numbers = #tpu.dot_dimension_numbers<[1], [0], [0], [1], [0, 0, 1, 1], [], []>} : vector<8x128xbf16>, vector<128x32xbf16>, vector<8x32xf32> -> vector<8x32xf32>
    %111 = arith.addf %107, %110 : vector<8x32xf32>
    %c0_81 = arith.constant 0 : index
    %c0_82 = arith.constant 0 : index
    %112 = vector.load %arg12[%c0_81, %c0_82] : memref<8x32xf32, #tpu.memory_space<vmem>>, vector<8x32xf32>
    tpu.vector_store %arg12[%c0_81, %c0_82], %111 {strides = array<i32>} : memref<8x32xf32, #tpu.memory_space<vmem>>, vector<8x32xf32>,
    %c0_83 = arith.constant 0 : index
    %c0_84 = arith.constant 0 : index
    %113 = vector.load %arg12[%c0_83, %c0_84] : memref<8x32xf32, #tpu.memory_space<vmem>>, vector<8x32xf32>
    %c0_85 = arith.constant 0 : index
    %c0_86 = arith.constant 0 : index
    %114 = vector.load %arg8[%c0_85, %c0_86] : memref<1x32xf32, #tpu.memory_space<vmem>>, vector<1x32xf32>
    %115 = vector.broadcast %114 : vector<1x32xf32> to vector<8x32xf32>
    %116 = arith.addf %113, %115 : vector<8x32xf32>
    %c0_87 = arith.constant 0 : index
    %c0_88 = arith.constant 0 : index
    %c0_89 = arith.constant 0 : index
    %117 = vector.load %arg9[%c0_87, %c0_88, %c0_89] : memref<1x8x32xf32, #tpu.memory_space<vmem>>, vector<1x8x32xf32>
    %118 = vector.shape_cast %117 : vector<1x8x32xf32> to vector<8x32xf32>
    %119 = vector.shape_cast %116 : vector<8x32xf32> to vector<1x8x32xf32>
    tpu.vector_store %arg9[%c0_87, %c0_88, %c0_89], %119 {strides = array<i32>} : memref<1x8x32xf32, #tpu.memory_space<vmem>>, vector<1x8x32xf32>,
    return
  }
  func.func @transform_0(%arg0: i32, %arg1: i32) -> (i32, i32, i32) {
    %c0_i32 = arith.constant 0 : i32
    %c0_i32_0 = arith.constant 0 : i32
    %c0_i32_1 = arith.constant 0 : i32
    return %arg0, %c0_i32, %c0_i32_0 : i32, i32, i32
  }
  func.func @transform_1(%arg0: i32, %arg1: i32) -> (i32, i32) {
    %c0_i32 = arith.constant 0 : i32
    %c0_i32_0 = arith.constant 0 : i32
    %c0_i32_1 = arith.constant 0 : i32
    return %c0_i32, %c0_i32_0 : i32, i32
  }
  func.func @transform_2(%arg0: i32, %arg1: i32) -> (i32, i32) {
    %c0_i32 = arith.constant 0 : i32
    %c0_i32_0 = arith.constant 0 : i32
    %c0_i32_1 = arith.constant 0 : i32
    return %c0_i32, %c0_i32_0 : i32, i32
  }
  func.func @transform_3(%arg0: i32, %arg1: i32) -> (i32, i32) {
    %c0_i32 = arith.constant 0 : i32
    %c0_i32_0 = arith.constant 0 : i32
    %c0_i32_1 = arith.constant 0 : i32
    return %c0_i32, %c0_i32_0 : i32, i32
  }
  func.func @transform_4(%arg0: i32, %arg1: i32) -> (i32, i32) {
    %c0_i32 = arith.constant 0 : i32
    %c0_i32_0 = arith.constant 0 : i32
    %c0_i32_1 = arith.constant 0 : i32
    return %c0_i32, %c0_i32_0 : i32, i32
  }
  func.func @transform_5(%arg0: i32, %arg1: i32) -> (i32, i32) {
    %c0_i32 = arith.constant 0 : i32
    %c0_i32_0 = arith.constant 0 : i32
    %c0_i32_1 = arith.constant 0 : i32
    return %c0_i32, %c0_i32_0 : i32, i32
  }
  func.func @transform_6(%arg0: i32, %arg1: i32) -> (i32, i32) {
    %c0_i32 = arith.constant 0 : i32
    %c0_i32_0 = arith.constant 0 : i32
    %c0_i32_1 = arith.constant 0 : i32
    return %c0_i32, %c0_i32_0 : i32, i32
  }
  func.func @transform_7(%arg0: i32, %arg1: i32) -> (i32, i32, i32) {
    %c0_i32 = arith.constant 0 : i32
    %c0_i32_0 = arith.constant 0 : i32
    return %arg0, %arg1, %c0_i32 : i32, i32, i32
  }
}

</mosaic_0001>

<llo_original>
// kernel: tpu_custom_call.1
$region0: #{tpu_custom_call.1}
  #allocation0 [shape = 'u32[]', space=smem, size = 0x4, offset = 0x4, fixed_abs, tag = 'smem constant byte address 0x4 - core index']
  #allocation1 [shape = 'u32[72,128]{1,0:T(1,128)}', space=vmem, size = 0x9000, scoped, tag = 'internal scratch']
  #allocation2 [shape = 'bf16[2,8,512]{2,1,0:T(8,128)(2,1)}', space=vmem, size = 0x4000, scoped, tag = 'scratch operand']
  #allocation3 [shape = 'bf16[8,512]{1,0:T(8,128)(2,1)}', space=vmem, size = 0x2000, scoped, tag = 'scratch operand']
  #allocation4 [shape = 'f32[8,32]{1,0:T(8,128)}', space=vmem, size = 0x1000, scoped, tag = 'scratch operand']
  %s0 = inlined_call_operand.vmem [shape: bf16[2,8,32], index: 0, kind: input, shape index: {}]
  %s1 = inlined_call_operand.vmem [shape: bf16[32,512], index: 1, kind: input, shape index: {}]
  %s2 = inlined_call_operand.vmem [shape: f32[1,512], index: 2, kind: input, shape index: {}]
  %s3 = inlined_call_operand.vmem [shape: bf16[32,1024], index: 3, kind: input, shape index: {}]
  %s4 = inlined_call_operand.vmem [shape: f32[1,1024], index: 4, kind: input, shape index: {}]
  %s5 = inlined_call_operand.vmem [shape: bf16[512,32], index: 5, kind: input, shape index: {}]
  %s6 = inlined_call_operand.vmem [shape: f32[1,32], index: 6, kind: input, shape index: {}]
  %s7 = inlined_call_operand.hbm [shape: f32[2,8,32], index: 7, kind: output, shape index: {}]
  %s8 = sld [smem:[#allocation0]]
  $region65: #{tpu_custom_call.1} parent=0
    _
  %s10 = ssub.s32 1, %s8
  %s11 = scalar_select 0, %s10, %s8
  $region1: #{tpu_custom_call.1} parent=0
    #allocation5 [shape = 'u8[8192]{0}', space=vmem, size = 0x2000, scoped, tag = 'output window, operand 0']
    #allocation6 [shape = 's32[2]{0}', space=sflag, size = 0x8, scoped, tag = 'scoped memory for tpu_custom_call.1']
    %12 = vsyncpa [#allocation6], 0
    %s13 = scalar_lea.sflag [#allocation6], 1
    %14 = vsyncpa %s13, 0
    loop: start=0, step=1, limit=4
    $region2: #{tpu_custom_call.1} parent=1 // loop_pre_header
      _
    $region3: #{tpu_custom_call.1} parent=1 // loop_header
      %s16 = sphi 0, %s20
      %p17 = scmp.ge.s32.totalorder %s16, 4
      %s23 = sphi 0, %s35
      %s24 = sphi 0, %s31
      %s25 = sphi 0, %s23
      %s26 = sphi 0, %s24
      %s27 = sphi 0, %s25
      %s28 = sphi 0, %s26
      %s38 = sphi 0, %s40
      %s41 = sphi 0, %s38
      %s42 = sphi 0, %s41
      %s58 = sphi 0, %s42
      %s62 = sphi 0, %s62
      %s64 = sphi 0, %s62
      %s65 = sphi 0, %s64
      %s79 = sphi 0, %s65
      %s83 = sphi 0, %s83
      %s85 = sphi 0, %s83
      %s86 = sphi 0, %s85
      %s100 = sphi 0, %s86
      %s104 = sphi 0, %s104
      %s106 = sphi 0, %s104
      %s107 = sphi 0, %s106
      %s121 = sphi 0, %s107
      %s125 = sphi 0, %s125
      %s127 = sphi 0, %s125
      %s128 = sphi 0, %s127
      %s142 = sphi 0, %s128
      %s146 = sphi 0, %s146
      %s148 = sphi 0, %s146
      %s149 = sphi 0, %s148
      %s163 = sphi 0, %s149
      %s167 = sphi 0, %s167
      %s169 = sphi 0, %s167
      %s170 = sphi 0, %s169
      %s184 = sphi 0, %s170
      %s192 = sphi 0, %s194
      %s195 = sphi 0, %s192
      %s196 = sphi 0, %s195
      %s212 = sphi 0, %s196
    $region4: #{tpu_custom_call.1} parent=1 // loop_header_branch
      %19 = sbr.rel (%p17) target = $region8
    $region5: #{tpu_custom_call.1} parent=1 // loop_body
      %s21 = ssub.s32 %s16, 1
      %s22 = ssub.s32 %s16, 2
      %s29 = sadd.s32 1, %s24
      %p30 = scmp.ge.s32.totalorder %s29, 1
      %s31 = scalar_select %p30, 0, %s29
      %s32 = sadd.s32 1, %s23
      %s33 = scalar_select %p30, %s32, %s23
      %p34 = scmp.ge.s32.totalorder %s33, 2
      %s35 = scalar_select %p34, 0, %s33
      %s36 = ssub.s32 %s23, %s35
      %p37 = scmp.eq.s32.totalorder %s36, 0
      %s39 = sadd.s32 %s38, 1
      %s40 = scalar_select %p37, %s38, %s39
      %p43 = pneg %p37
      %p44 = scmp.eq.s32.totalorder %s16, 1
      %p45 = por %p43, %p44
      %p46 = scmp.ne.s32.totalorder %s38, %s41
      %p47 = scmp.eq.s32.totalorder %s16, 0
      %p48 = por %p46, %p47
      %p49 = scmp.ne.s32.totalorder %s38, %s41
      %p50 = scmp.eq.s32.totalorder %s21, 1
      %p51 = por %p49, %p50
      %p52 = scmp.ne.s32.totalorder %s41, %s42
      %p53 = scmp.eq.s32.totalorder %s21, 0
      %p54 = por %p52, %p53
      %p55 = scmp.ne.s32.totalorder %s41, %s42
      %p56 = scmp.eq.s32.totalorder %s22, 1
      %p57 = por %p55, %p56
      %p59 = scmp.ne.s32.totalorder %s42, %s58
      %p60 = scmp.eq.s32.totalorder %s22, 0
      %p61 = por %p59, %p60
      %s63 = sadd.s32 %s62, 1
      %p66 = scmp.eq.s32.totalorder %s16, 1
      %p67 = scmp.ne.s32.totalorder %s62, %s64
      %p68 = scmp.eq.s32.totalorder %s16, 0
      %p69 = por %p67, %p68
      %p70 = scmp.ne.s32.totalorder %s62, %s64
      %p71 = scmp.eq.s32.totalorder %s21, 1
      %p72 = por %p70, %p71
      %p73 = scmp.ne.s32.totalorder %s64, %s65
      %p74 = scmp.eq.s32.totalorder %s21, 0
      %p75 = por %p73, %p74
      %p76 = scmp.ne.s32.totalorder %s64, %s65
      %p77 = scmp.eq.s32.totalorder %s22, 1
      %p78 = por %p76, %p77
      %p80 = scmp.ne.s32.totalorder %s65, %s79
      %p81 = scmp.eq.s32.totalorder %s22, 0
      %p82 = por %p80, %p81
      %s84 = sadd.s32 %s83, 1
      %p87 = scmp.eq.s32.totalorder %s16, 1
      %p88 = scmp.ne.s32.totalorder %s83, %s85
      %p89 = scmp.eq.s32.totalorder %s16, 0
      %p90 = por %p88, %p89
      %p91 = scmp.ne.s32.totalorder %s83, %s85
      %p92 = scmp.eq.s32.totalorder %s21, 1
      %p93 = por %p91, %p92
      %p94 = scmp.ne.s32.totalorder %s85, %s86
      %p95 = scmp.eq.s32.totalorder %s21, 0
      %p96 = por %p94, %p95
      %p97 = scmp.ne.s32.totalorder %s85, %s86
      %p98 = scmp.eq.s32.totalorder %s22, 1
      %p99 = por %p97, %p98
      %p101 = scmp.ne.s32.totalorder %s86, %s100
      %p102 = scmp.eq.s32.totalorder %s22, 0
      %p103 = por %p101, %p102
      %s105 = sadd.s32 %s104, 1
      %p108 = scmp.eq.s32.totalorder %s16, 1
      %p109 = scmp.ne.s32.totalorder %s104, %s106
      %p110 = scmp.eq.s32.totalorder %s16, 0
      %p111 = por %p109, %p110
      %p112 = scmp.ne.s32.totalorder %s104, %s106
      %p113 = scmp.eq.s32.totalorder %s21, 1
      %p114 = por %p112, %p113
      %p115 = scmp.ne.s32.totalorder %s106, %s107
      %p116 = scmp.eq.s32.totalorder %s21, 0
      %p117 = por %p115, %p116
      %p118 = scmp.ne.s32.totalorder %s106, %s107
      %p119 = scmp.eq.s32.totalorder %s22, 1
      %p120 = por %p118, %p119
      %p122 = scmp.ne.s32.totalorder %s107, %s121
      %p123 = scmp.eq.s32.totalorder %s22, 0
      %p124 = por %p122, %p123
      %s126 = sadd.s32 %s125, 1
      %p129 = scmp.eq.s32.totalorder %s16, 1
      %p130 = scmp.ne.s32.totalorder %s125, %s127
      %p131 = scmp.eq.s32.totalorder %s16, 0
      %p132 = por %p130, %p131
      %p133 = scmp.ne.s32.totalorder %s125, %s127
      %p134 = scmp.eq.s32.totalorder %s21, 1
      %p135 = por %p133, %p134
      %p136 = scmp.ne.s32.totalorder %s127, %s128
      %p137 = scmp.eq.s32.totalorder %s21, 0
      %p138 = por %p136, %p137
      %p139 = scmp.ne.s32.totalorder %s127, %s128
      %p140 = scmp.eq.s32.totalorder %s22, 1
      %p141 = por %p139, %p140
      %p143 = scmp.ne.s32.totalorder %s128, %s142
      %p144 = scmp.eq.s32.totalorder %s22, 0
      %p145 = por %p143, %p144
      %s147 = sadd.s32 %s146, 1
      %p150 = scmp.eq.s32.totalorder %s16, 1
      %p151 = scmp.ne.s32.totalorder %s146, %s148
      %p152 = scmp.eq.s32.totalorder %s16, 0
      %p153 = por %p151, %p152
      %p154 = scmp.ne.s32.totalorder %s146, %s148
      %p155 = scmp.eq.s32.totalorder %s21, 1
      %p156 = por %p154, %p155
      %p157 = scmp.ne.s32.totalorder %s148, %s149
      %p158 = scmp.eq.s32.totalorder %s21, 0
      %p159 = por %p157, %p158
      %p160 = scmp.ne.s32.totalorder %s148, %s149
      %p161 = scmp.eq.s32.totalorder %s22, 1
      %p162 = por %p160, %p161
      %p164 = scmp.ne.s32.totalorder %s149, %s163
      %p165 = scmp.eq.s32.totalorder %s22, 0
      %p166 = por %p164, %p165
      %s168 = sadd.s32 %s167, 1
      %p171 = scmp.eq.s32.totalorder %s16, 1
      %p172 = scmp.ne.s32.totalorder %s167, %s169
      %p173 = scmp.eq.s32.totalorder %s16, 0
      %p174 = por %p172, %p173
      %p175 = scmp.ne.s32.totalorder %s167, %s169
      %p176 = scmp.eq.s32.totalorder %s21, 1
      %p177 = por %p175, %p176
      %p178 = scmp.ne.s32.totalorder %s169, %s170
      %p179 = scmp.eq.s32.totalorder %s21, 0
      %p180 = por %p178, %p179
      %p181 = scmp.ne.s32.totalorder %s169, %s170
      %p182 = scmp.eq.s32.totalorder %s22, 1
      %p183 = por %p181, %p182
      %p185 = scmp.ne.s32.totalorder %s170, %s184
      %p186 = scmp.eq.s32.totalorder %s22, 0
      %p187 = por %p185, %p186
      %s188 = ssub.s32 %s23, %s35
      %s189 = ssub.s32 %s24, %s31
      %s190 = sor.u32 %s188, %s189
      %p191 = scmp.eq.s32.totalorder %s190, 0
      %s193 = sadd.s32 %s192, 1
      %s194 = scalar_select %p191, %s192, %s193
      %p197 = pneg %p191
      %p198 = scmp.eq.s32.totalorder %s16, 1
      %p199 = por %p197, %p198
      %p200 = scmp.ne.s32.totalorder %s192, %s195
      %p201 = scmp.eq.s32.totalorder %s16, 0
      %p202 = por %p200, %p201
      %p203 = scmp.ne.s32.totalorder %s192, %s195
      %p204 = scmp.eq.s32.totalorder %s21, 1
      %p205 = por %p203, %p204
      %p206 = scmp.ne.s32.totalorder %s195, %s196
      %p207 = scmp.eq.s32.totalorder %s21, 0
      %p208 = por %p206, %p207
      %p209 = scmp.ne.s32.totalorder %s195, %s196
      %p210 = scmp.eq.s32.totalorder %s22, 1
      %p211 = por %p209, %p210
      %p213 = scmp.ne.s32.totalorder %s196, %s212
      %p214 = scmp.eq.s32.totalorder %s22, 0
      %p215 = por %p213, %p214
      %p216 = scmp.le.s32.totalorder 1, %s16
      %p217 = scmp.lt.s32.totalorder %s16, 3
      %p218 = pnand %p216, %p217
      %p219 = pneg %p218
      // Predicated region
      $region9: #{tpu_custom_call.1} parent=5 // pred_check
        _
      $region10: #{tpu_custom_call.1} parent=5 // pred_check_branch
        %221 = sbr.rel (%p218) target = $region12
      $region11: #{tpu_custom_call.1} parent=5 // pred_region
        %s222 = ssub.s32 %s16, 1
        // Predicated region
        $region13: #{tpu_custom_call.1} parent=11 // pred_check
          %p223 = pneg %p75
        $region14: #{tpu_custom_call.1} parent=11 // pred_check_branch
          %225 = sbr.rel (%p223) target = $region16
        $region15: #{tpu_custom_call.1} parent=11 // pred_region
          _
        $region16: #{tpu_custom_call.1} parent=11 // pred_fallthru
          _
        // Predicated region
        $region17: #{tpu_custom_call.1} parent=11 // pred_check
          %p226 = pneg %p96
        $region18: #{tpu_custom_call.1} parent=11 // pred_check_branch
          %228 = sbr.rel (%p226) target = $region20
        $region19: #{tpu_custom_call.1} parent=11 // pred_region
          _
        $region20: #{tpu_custom_call.1} parent=11 // pred_fallthru
          _
        // Predicated region
        $region21: #{tpu_custom_call.1} parent=11 // pred_check
          %p229 = pneg %p117
        $region22: #{tpu_custom_call.1} parent=11 // pred_check_branch
          %231 = sbr.rel (%p229) target = $region24
        $region23: #{tpu_custom_call.1} parent=11 // pred_region
          _
        $region24: #{tpu_custom_call.1} parent=11 // pred_fallthru
          _
        // Predicated region
        $region25: #{tpu_custom_call.1} parent=11 // pred_check
          %p232 = pneg %p138
        $region26: #{tpu_custom_call.1} parent=11 // pred_check_branch
          %234 = sbr.rel (%p232) target = $region28
        $region27: #{tpu_custom_call.1} parent=11 // pred_region
          _
        $region28: #{tpu_custom_call.1} parent=11 // pred_fallthru
          _
        // Predicated region
        $region29: #{tpu_custom_call.1} parent=11 // pred_check
          %p235 = pneg %p159
        $region30: #{tpu_custom_call.1} parent=11 // pred_check_branch
          %237 = sbr.rel (%p235) target = $region32
        $region31: #{tpu_custom_call.1} parent=11 // pred_region
          _
        $region32: #{tpu_custom_call.1} parent=11 // pred_fallthru
          _
        // Predicated region
        $region33: #{tpu_custom_call.1} parent=11 // pred_check
          %p238 = pneg %p180
        $region34: #{tpu_custom_call.1} parent=11 // pred_check_branch
          %240 = sbr.rel (%p238) target = $region36
        $region35: #{tpu_custom_call.1} parent=11 // pred_region
          _
        $region36: #{tpu_custom_call.1} parent=11 // pred_fallthru
          _
      $region12: #{tpu_custom_call.1} parent=5 // pred_fallthru
        _
      %p241 = scmp.lt.s32.totalorder %s16, 2
      // Predicated region
      $region37: #{tpu_custom_call.1} parent=5 // pred_check
        %p242 = pneg %p241
      $region38: #{tpu_custom_call.1} parent=5 // pred_check_branch
        %244 = sbr.rel (%p242) target = $region40
      $region39: #{tpu_custom_call.1} parent=5 // pred_region
        // Predicated region
        $region41: #{tpu_custom_call.1} parent=39 // pred_check
          %p245 = pneg %p48
        $region42: #{tpu_custom_call.1} parent=39 // pred_check_branch
          %247 = sbr.rel (%p245) target = $region44
        $region43: #{tpu_custom_call.1} parent=39 // pred_region
          %p248 = scmp.lt.s32.totalorder %s23, 1
          %s249 = scalar_select %p248, %s23, 1
          %s250 = smul.addr %s249, 4
          %s251 = scalar_lea.vmem %s0, %s250
        $region44: #{tpu_custom_call.1} parent=39 // pred_fallthru
          _
      $region40: #{tpu_custom_call.1} parent=5 // pred_fallthru
        _
      %p252 = scmp.le.s32.totalorder 1, %s16
      %p253 = scmp.lt.s32.totalorder %s16, 3
      %p254 = pnand %p252, %p253
      %p255 = pneg %p254
      // Predicated region
      $region45: #{tpu_custom_call.1} parent=5 // pred_check
        _
      $region46: #{tpu_custom_call.1} parent=5 // pred_check_branch
        %257 = sbr.rel (%p254) target = $region48
      $region47: #{tpu_custom_call.1} parent=5 // pred_region
        %s258 = ssub.s32 %s16, 1
        %p259 = scmp.lt.s32.totalorder %s25, 1
        %s260 = scalar_select %p259, %s25, 1
        %s261 = smul.addr %s260, 4
        %s262 = scalar_lea.vmem %s0, %s261
        %p263 = pneg %p54
        %p264 = pneg %p51
        %p265 = pneg %p75
        %p266 = pneg %p72
        %p267 = pneg %p96
        %p268 = pneg %p93
        %p269 = pneg %p117
        %p270 = pneg %p114
        %p271 = pneg %p138
        %p272 = pneg %p135
        %p273 = pneg %p159
        %p274 = pneg %p156
        %p275 = pneg %p180
        %p276 = pneg %p177
        %p277 = pneg %p208
        %p278 = pneg %p205
        %s279 = sand.u32 %s195, 1
        %s280 = scalar_lea.sflag [#allocation6], %s279
        %s281 = sand.u32 %s195, 1
        %s282 = smul.addr %s281, 8
        %s283 = scalar_lea.vmem [#allocation5], %s282
        %p284 = scmp.lt.s32.totalorder %s25, 1
        %s285 = scalar_select %p284, %s25, 1
        %s286 = smul.addr %s285, 4
        %s287 = scalar_lea.vmem %s0, %s286
        %p289 = scmp.eq.s32.totalorder %s26, 0
        // Predicated region
        $region49: #{tpu_custom_call.1} parent=47 // pred_check
          %p290 = pneg %p289
        $region50: #{tpu_custom_call.1} parent=47 // pred_check_branch
          %292 = sbr.rel (%p290) target = $region52
        $region51: #{tpu_custom_call.1} parent=47 // pred_region
          %v293 = vld [vmem:[%s287] sm:$0xf]
          %v294 = vld [vmem:[%s3] sm:$0xff]
          %v295 = vld [vmem:[%s3 + $0x8] sm:$0xff]
          %v296 = vld [vmem:[%s3 + $0x10] sm:$0xff]
          %v297 = vld [vmem:[%s3 + $0x18] sm:$0xff]
          %v298 = vld [vmem:[%s3 + $0x20] sm:$0xff]
          %v299 = vld [vmem:[%s3 + $0x28] sm:$0xff]
          %v300 = vld [vmem:[%s3 + $0x30] sm:$0xff]
          %v301 = vld [vmem:[%s3 + $0x38] sm:$0xff]
          %v302 = vld [vmem:[%s3 + $0x40] sm:$0xff]
          %v303 = vld [vmem:[%s3 + $0x48] sm:$0xff]
          %v304 = vld [vmem:[%s3 + $0x50] sm:$0xff]
          %v305 = vld [vmem:[%s3 + $0x58] sm:$0xff]
          %v306 = vld [vmem:[%s3 + $0x60] sm:$0xff]
          %v307 = vld [vmem:[%s3 + $0x68] sm:$0xff]
          %v308 = vld [vmem:[%s3 + $0x70] sm:$0xff]
          %v309 = vld [vmem:[%s3 + $0x78] sm:$0xff]
          %v310 = vld [vmem:[%s4] sm:$0xff]
          %v312 = vperm.slane %v310, 0
          %v313 = vperm.slane %v310, 1
          %v314 = vperm.slane %v310, 2
          %v315 = vperm.slane %v310, 3
          %v316 = vperm.slane %v310, 4
          %v317 = vperm.slane %v310, 5
          %v318 = vperm.slane %v310, 6
          %v319 = vperm.slane %v310, 7
          %v344 = vunpack.c.l.b16 %v294
          %v345 = vunpack.c.h.b16 %v294
          %v346 = vunpack.c.l.b16 %v295
          %v347 = vunpack.c.h.b16 %v295
          %v348 = vunpack.c.l.b16 %v296
          %v349 = vunpack.c.h.b16 %v296
          %v350 = vunpack.c.l.b16 %v297
          %v351 = vunpack.c.h.b16 %v297
          %v352 = vunpack.c.l.b16 %v298
          %v353 = vunpack.c.h.b16 %v298
          %v354 = vunpack.c.l.b16 %v299
          %v355 = vunpack.c.h.b16 %v299
          %v356 = vunpack.c.l.b16 %v300
          %v357 = vunpack.c.h.b16 %v300
          %v358 = vunpack.c.l.b16 %v301
          %v359 = vunpack.c.h.b16 %v301
          %v360 = vunpack.c.l.b16 %v302
          %v361 = vunpack.c.h.b16 %v302
          %v362 = vunpack.c.l.b16 %v303
          %v363 = vunpack.c.h.b16 %v303
          %v364 = vunpack.c.l.b16 %v304
          %v365 = vunpack.c.h.b16 %v304
          %v366 = vunpack.c.l.b16 %v305
          %v367 = vunpack.c.h.b16 %v305
          %v368 = vunpack.c.l.b16 %v306
          %v369 = vunpack.c.h.b16 %v306
          %v370 = vunpack.c.l.b16 %v307
          %v371 = vunpack.c.h.b16 %v307
          %v372 = vunpack.c.l.b16 %v308
          %v373 = vunpack.c.h.b16 %v308
          %v374 = vunpack.c.l.b16 %v309
          %v375 = vunpack.c.h.b16 %v309
          %v376 = vpack.c.b16 %v352, %v344
          %v377 = vpack.c.b16 %v353, %v345
          %v378 = vpack.c.b16 %v354, %v346
          %v379 = vpack.c.b16 %v355, %v347
          %v380 = vpack.c.b16 %v356, %v348
          %v381 = vpack.c.b16 %v357, %v349
          %v382 = vpack.c.b16 %v358, %v350
          %v383 = vpack.c.b16 %v359, %v351
          %v384 = vpack.c.b16 %v368, %v360
          %v385 = vpack.c.b16 %v369, %v361
          %v386 = vpack.c.b16 %v370, %v362
          %v387 = vpack.c.b16 %v371, %v363
          %v388 = vpack.c.b16 %v372, %v364
          %v389 = vpack.c.b16 %v373, %v365
          %v390 = vpack.c.b16 %v374, %v366
          %v391 = vpack.c.b16 %v375, %v367
          %vm408 = vcmask 261120
          %v410 = vsel %vm408, %v293, 0
          %412 = vmatpush.bf16.msra.mxu0 0
          %413 = vmatpush.bf16.msra.mxu0 0
          %414 = vmatpush.bf16.msra.mxu0 0
          %415 = vmatpush.bf16.msra.mxu0 0
          %416 = vmatpush.bf16.msra.mxu0 0
          %417 = vmatpush.bf16.msra.mxu0 0
          %418 = vmatpush.bf16.msra.mxu0 %v384
          %419 = vmatpush.bf16.msra.mxu0 %v376
          %420 = vmatmul.bf16.gmra.mxu0 %v410
          %v421 = vpop.f32.mrf.mxu0
          %v422 = vadd.f32 %v312, %v421
          %v423 = vpop.f32.mrf.mxu0
          %424 = vdwg.mxu0
          %425 = vmatpush.bf16.msra.mxu0 0
          %426 = vmatpush.bf16.msra.mxu0 0
          %427 = vmatpush.bf16.msra.mxu0 0
          %428 = vmatpush.bf16.msra.mxu0 0
          %429 = vmatpush.bf16.msra.mxu0 0
          %430 = vmatpush.bf16.msra.mxu0 0
          %431 = vmatpush.bf16.msra.mxu0 %v385
          %432 = vmatpush.bf16.msra.mxu0 %v377
          %433 = vmatmul.bf16.gmra.mxu0 %v410
          %v434 = vpop.f32.mrf.mxu0
          %v435 = vadd.f32 %v313, %v434
          %v436 = vpop.f32.mrf.mxu0
          %437 = vdwg.mxu0
          %438 = vmatpush.bf16.msra.mxu0 0
          %439 = vmatpush.bf16.msra.mxu0 0
          %440 = vmatpush.bf16.msra.mxu0 0
          %441 = vmatpush.bf16.msra.mxu0 0
          %442 = vmatpush.bf16.msra.mxu0 0
          %443 = vmatpush.bf16.msra.mxu0 0
          %444 = vmatpush.bf16.msra.mxu0 %v386
          %445 = vmatpush.bf16.msra.mxu0 %v378
          %446 = vmatmul.bf16.gmra.mxu0 %v410
          %v447 = vpop.f32.mrf.mxu0
          %v448 = vadd.f32 %v314, %v447
          %v449 = vpop.f32.mrf.mxu0
          %450 = vdwg.mxu0
          %451 = vmatpush.bf16.msra.mxu0 0
          %452 = vmatpush.bf16.msra.mxu0 0
          %453 = vmatpush.bf16.msra.mxu0 0
          %454 = vmatpush.bf16.msra.mxu0 0
          %455 = vmatpush.bf16.msra.mxu0 0
          %456 = vmatpush.bf16.msra.mxu0 0
          %457 = vmatpush.bf16.msra.mxu0 %v387
          %458 = vmatpush.bf16.msra.mxu0 %v379
          %459 = vmatmul.bf16.gmra.mxu0 %v410
          %v460 = vpop.f32.mrf.mxu0
          %v461 = vadd.f32 %v315, %v460
          %v462 = vpop.f32.mrf.mxu0
          %463 = vdwg.mxu0
          %464 = vmatpush.bf16.msra.mxu0 0
          %465 = vmatpush.bf16.msra.mxu0 0
          %466 = vmatpush.bf16.msra.mxu0 0
          %467 = vmatpush.bf16.msra.mxu0 0
          %468 = vmatpush.bf16.msra.mxu0 0
          %469 = vmatpush.bf16.msra.mxu0 0
          %470 = vmatpush.bf16.msra.mxu0 %v388
          %471 = vmatpush.bf16.msra.mxu0 %v380
          %472 = vmatmul.bf16.gmra.mxu0 %v410
          %v473 = vpop.f32.mrf.mxu0
          %v474 = vadd.f32 %v316, %v473
          %v475 = vpop.f32.mrf.mxu0
          %476 = vdwg.mxu0
          %477 = vmatpush.bf16.msra.mxu0 0
          %478 = vmatpush.bf16.msra.mxu0 0
          %479 = vmatpush.bf16.msra.mxu0 0
          %480 = vmatpush.bf16.msra.mxu0 0
          %481 = vmatpush.bf16.msra.mxu0 0
          %482 = vmatpush.bf16.msra.mxu0 0
          %483 = vmatpush.bf16.msra.mxu0 %v389
          %484 = vmatpush.bf16.msra.mxu0 %v381
          %485 = vmatmul.bf16.gmra.mxu0 %v410
          %v486 = vpop.f32.mrf.mxu0
          %v487 = vadd.f32 %v317, %v486
          %v488 = vpop.f32.mrf.mxu0
          %489 = vdwg.mxu0
          %490 = vmatpush.bf16.msra.mxu0 0
          %491 = vmatpush.bf16.msra.mxu0 0
          %492 = vmatpush.bf16.msra.mxu0 0
          %493 = vmatpush.bf16.msra.mxu0 0
          %494 = vmatpush.bf16.msra.mxu0 0
          %495 = vmatpush.bf16.msra.mxu0 0
          %496 = vmatpush.bf16.msra.mxu0 %v390
          %497 = vmatpush.bf16.msra.mxu0 %v382
          %498 = vmatmul.bf16.gmra.mxu0 %v410
          %v499 = vpop.f32.mrf.mxu0
          %v500 = vadd.f32 %v318, %v499
          %v501 = vpop.f32.mrf.mxu0
          %502 = vdwg.mxu0
          %503 = vmatpush.bf16.msra.mxu0 0
          %504 = vmatpush.bf16.msra.mxu0 0
          %505 = vmatpush.bf16.msra.mxu0 0
          %506 = vmatpush.bf16.msra.mxu0 0
          %507 = vmatpush.bf16.msra.mxu0 0
          %508 = vmatpush.bf16.msra.mxu0 0
          %509 = vmatpush.bf16.msra.mxu0 %v391
          %510 = vmatpush.bf16.msra.mxu0 %v383
          %511 = vmatmul.bf16.gmra.mxu0 %v410
          %v512 = vpop.f32.mrf.mxu0
          %v513 = vadd.f32 %v319, %v512
          %v514 = vpop.f32.mrf.mxu0
          %515 = vdwg.mxu0
          %v516 = vpack.c.bf16 %v435, %v422
          %v517 = vpack.c.bf16 %v461, %v448
          %518 = vst [vmem:[#allocation2] sm:$0xff] %v516
          %519 = vst [vmem:[#allocation2 + $0x8] sm:$0xff] %v517
          %v520 = vpack.c.bf16 %v487, %v474
          %v521 = vpack.c.bf16 %v513, %v500
          %s522 = scalar_lea.vmem [#allocation2], 16
          %523 = vst [vmem:[%s522] sm:$0xff] %v520
          %524 = vst [vmem:[%s522 + $0x8] sm:$0xff] %v521
        $region52: #{tpu_custom_call.1} parent=47 // pred_fallthru
          _
        %s525 = smul.u32 %s26, 8
        %s526 = sshra.s32 %s525, 3
        %s527 = sand.u32 %s525, 7
        %s528 = smul.addr %s526, 4
        %s529 = scalar_lea.vmem %s287, %s528
        %v530 = vld [vmem:[%s529] sm:$0xf]
        %v531 = vld [vmem:[%s1] sm:$0xff]
        %v532 = vld [vmem:[%s1 + $0x8] sm:$0xff]
        %v533 = vld [vmem:[%s1 + $0x10] sm:$0xff]
        %v534 = vld [vmem:[%s1 + $0x18] sm:$0xff]
        %v535 = vld [vmem:[%s1 + $0x20] sm:$0xff]
        %v536 = vld [vmem:[%s1 + $0x28] sm:$0xff]
        %v537 = vld [vmem:[%s1 + $0x30] sm:$0xff]
        %v538 = vld [vmem:[%s1 + $0x38] sm:$0xff]
        %v539 = vld [vmem:[%s2] sm:$0xf]
        %v541 = vperm.slane %v539, 0
        %v542 = vperm.slane %v539, 1
        %v543 = vperm.slane %v539, 2
        %v544 = vperm.slane %v539, 3
        %v557 = vunpack.c.l.b16 %v531
        %v558 = vunpack.c.h.b16 %v531
        %v559 = vunpack.c.l.b16 %v532
        %v560 = vunpack.c.h.b16 %v532
        %v561 = vunpack.c.l.b16 %v533
        %v562 = vunpack.c.h.b16 %v533
        %v563 = vunpack.c.l.b16 %v534
        %v564 = vunpack.c.h.b16 %v534
        %v565 = vunpack.c.l.b16 %v535
        %v566 = vunpack.c.h.b16 %v535
        %v567 = vunpack.c.l.b16 %v536
        %v568 = vunpack.c.h.b16 %v536
        %v569 = vunpack.c.l.b16 %v537
        %v570 = vunpack.c.h.b16 %v537
        %v571 = vunpack.c.l.b16 %v538
        %v572 = vunpack.c.h.b16 %v538
        %v573 = vpack.c.b16 %v561, %v557
        %v574 = vpack.c.b16 %v562, %v558
        %v575 = vpack.c.b16 %v563, %v559
        %v576 = vpack.c.b16 %v564, %v560
        %v577 = vpack.c.b16 %v569, %v565
        %v578 = vpack.c.b16 %v570, %v566
        %v579 = vpack.c.b16 %v571, %v567
        %v580 = vpack.c.b16 %v572, %v568
        %vm589 = vcmask 261120
        %v591 = vsel %vm589, %v530, 0
        %593 = vmatpush.bf16.msra.mxu0 0
        %594 = vmatpush.bf16.msra.mxu0 0
        %595 = vmatpush.bf16.msra.mxu0 0
        %596 = vmatpush.bf16.msra.mxu0 0
        %597 = vmatpush.bf16.msra.mxu0 0
        %598 = vmatpush.bf16.msra.mxu0 0
        %599 = vmatpush.bf16.msra.mxu0 %v577
        %600 = vmatpush.bf16.msra.mxu0 %v573
        %601 = vmatmul.bf16.gmra.mxu0 %v591
        %v602 = vpop.f32.mrf.mxu0
        %v603 = vadd.f32 %v541, %v602
        %v604 = vpop.f32.mrf.mxu0
        %605 = vdwg.mxu0
        %606 = vmatpush.bf16.msra.mxu0 0
        %607 = vmatpush.bf16.msra.mxu0 0
        %608 = vmatpush.bf16.msra.mxu0 0
        %609 = vmatpush.bf16.msra.mxu0 0
        %610 = vmatpush.bf16.msra.mxu0 0
        %611 = vmatpush.bf16.msra.mxu0 0
        %612 = vmatpush.bf16.msra.mxu0 %v578
        %613 = vmatpush.bf16.msra.mxu0 %v574
        %614 = vmatmul.bf16.gmra.mxu0 %v591
        %v615 = vpop.f32.mrf.mxu0
        %v616 = vadd.f32 %v542, %v615
        %v617 = vpop.f32.mrf.mxu0
        %618 = vdwg.mxu0
        %619 = vmatpush.bf16.msra.mxu0 0
        %620 = vmatpush.bf16.msra.mxu0 0
        %621 = vmatpush.bf16.msra.mxu0 0
        %622 = vmatpush.bf16.msra.mxu0 0
        %623 = vmatpush.bf16.msra.mxu0 0
        %624 = vmatpush.bf16.msra.mxu0 0
        %625 = vmatpush.bf16.msra.mxu0 %v579
        %626 = vmatpush.bf16.msra.mxu0 %v575
        %627 = vmatmul.bf16.gmra.mxu0 %v591
        %v628 = vpop.f32.mrf.mxu0
        %v629 = vadd.f32 %v543, %v628
        %v630 = vpop.f32.mrf.mxu0
        %631 = vdwg.mxu0
        %632 = vmatpush.bf16.msra.mxu0 0
        %633 = vmatpush.bf16.msra.mxu0 0
        %634 = vmatpush.bf16.msra.mxu0 0
        %635 = vmatpush.bf16.msra.mxu0 0
        %636 = vmatpush.bf16.msra.mxu0 0
        %637 = vmatpush.bf16.msra.mxu0 0
        %638 = vmatpush.bf16.msra.mxu0 %v580
        %639 = vmatpush.bf16.msra.mxu0 %v576
        %640 = vmatmul.bf16.gmra.mxu0 %v591
        %v641 = vpop.f32.mrf.mxu0
        %v642 = vadd.f32 %v544, %v641
        %v643 = vpop.f32.mrf.mxu0
        %644 = vdwg.mxu0
        %v645 = vpack.c.bf16 %v616, %v603
        %v646 = vpack.c.bf16 %v642, %v629
        %647 = vst [vmem:[#allocation3] sm:$0xff] %v645
        %648 = vst [vmem:[#allocation3 + $0x8] sm:$0xff] %v646
        %649 = vst.msk [vmem:[#allocation4] sm:$0xff] %vm589, 0.0
        %v650 = vld [vmem:[#allocation3] sm:$0xf]
        %v651 = vld [vmem:[#allocation2] sm:$0xf]
        %s652 = scalar_lea.vmem [#allocation2], 16
        %v653 = vld [vmem:[%s652] sm:$0xf]
        %654 = vmatpush.bf16.xpose.msra.mxu0 0
        %655 = vmatpush.bf16.xpose.msra.mxu0 0
        %656 = vmatpush.bf16.xpose.msra.mxu0 0
        %657 = vmatpush.bf16.xpose.msra.mxu0 0
        %658 = vmatpush.bf16.xpose.msra.mxu0 0
        %659 = vmatpush.bf16.xpose.msra.mxu0 0
        %660 = vmatpush.bf16.xpose.msra.mxu0 0
        %661 = vmatpush.bf16.xpose.msra.mxu0 %v651
        %662 = vmatmul.bf16.gmra.mxu0 %v650
        %v663 = vpop.f32.mrf.mxu0
        %v664 = vadd.f32 0.0, %v663
        %v665 = vpop.f32.mrf.mxu0
        %666 = vdwg.mxu0
        %vm667 = vcmask 64512
        %v668 = vsel %vm667, %v664, -inf
        %669 = vmax.xlane.f32.xlu0 %v668
        %v670 = vpop.xlane.xlu0 %669
        %v671 = vsub.f32 %v664, %v670
        %v672 = vmul.f32 %v671, 1.442695
        %v673 = vpow.pop %v672
        %v674 = vsel %vm667, %v673, 0.0
        %675 = vadd.xlane.f32.xlu0 %v674
        %v676 = vpop.xlane.xlu0 %675
        %v677 = vrcp.pop %v676
        %v678 = vmul.f32 %v673, %v677
        %v679 = vpack.c.bf16 %v678, %v678
        %v681 = vsel %vm667, %v679, 0
        %vm683 = vcmask 1043456
        %v685 = vsel %vm683, %v653, 0
        %687 = vmatpush.bf16.msra.mxu0 0
        %688 = vmatpush.bf16.msra.mxu0 0
        %689 = vmatpush.bf16.msra.mxu0 0
        %690 = vmatpush.bf16.msra.mxu0 0
        %691 = vmatpush.bf16.msra.mxu0 0
        %692 = vmatpush.bf16.msra.mxu0 0
        %693 = vmatpush.bf16.msra.mxu0 0
        %694 = vmatpush.bf16.msra.mxu0 %v685
        %695 = vmatmul.bf16.gmra.mxu0 %v681
        %v696 = vpop.f32.mrf.mxu0
        %v697 = vadd.f32 0.0, %v696
        %v698 = vpop.f32.mrf.mxu0
        %699 = vdwg.mxu0
        %v700 = vld [vmem:[#allocation4] sm:$0xff]
        %v701 = vpack.c.bf16 %v697, %v697
        %v702 = vld [vmem:[%s5] sm:$0xf]
        %v703 = vld [vmem:[%s5 + $0x4] sm:$0xf]
        %v704 = vld [vmem:[%s5 + $0x8] sm:$0xf]
        %v705 = vld [vmem:[%s5 + $0xc] sm:$0xf]
        %v706 = vld [vmem:[%s5 + $0x10] sm:$0xf]
        %v707 = vld [vmem:[%s5 + $0x14] sm:$0xf]
        %v708 = vld [vmem:[%s5 + $0x18] sm:$0xf]
        %v709 = vld [vmem:[%s5 + $0x1c] sm:$0xf]
        %v710 = vld [vmem:[%s5 + $0x20] sm:$0xf]
        %v711 = vld [vmem:[%s5 + $0x24] sm:$0xf]
        %v712 = vld [vmem:[%s5 + $0x28] sm:$0xf]
        %v713 = vld [vmem:[%s5 + $0x2c] sm:$0xf]
        %v714 = vld [vmem:[%s5 + $0x30] sm:$0xf]
        %v715 = vld [vmem:[%s5 + $0x34] sm:$0xf]
        %v716 = vld [vmem:[%s5 + $0x38] sm:$0xf]
        %v717 = vld [vmem:[%s5 + $0x3c] sm:$0xf]
        %v734 = vunpack.c.l.b16 %v702
        %v735 = vunpack.c.l.b16 %v703
        %v736 = vunpack.c.l.b16 %v704
        %v737 = vunpack.c.l.b16 %v705
        %v738 = vunpack.c.l.b16 %v706
        %v739 = vunpack.c.l.b16 %v707
        %v740 = vunpack.c.l.b16 %v708
        %v741 = vunpack.c.l.b16 %v709
        %v742 = vunpack.c.l.b16 %v710
        %v743 = vunpack.c.l.b16 %v711
        %v744 = vunpack.c.l.b16 %v712
        %v745 = vunpack.c.l.b16 %v713
        %v746 = vunpack.c.l.b16 %v714
        %v747 = vunpack.c.l.b16 %v715
        %v748 = vunpack.c.l.b16 %v716
        %v749 = vunpack.c.l.b16 %v717
        %v750 = vpack.c.b16 %v735, %v734
        %v751 = vpack.c.b16 %v737, %v736
        %v752 = vpack.c.b16 %v739, %v738
        %v753 = vpack.c.b16 %v741, %v740
        %v754 = vpack.c.b16 %v743, %v742
        %v755 = vpack.c.b16 %v745, %v744
        %v756 = vpack.c.b16 %v747, %v746
        %v757 = vpack.c.b16 %v749, %v748
        %766 = vmatpush.bf16.msra.mxu0 %v757
        %767 = vmatpush.bf16.msra.mxu0 %v756
        %768 = vmatpush.bf16.msra.mxu0 %v755
        %769 = vmatpush.bf16.msra.mxu0 %v754
        %770 = vmatpush.bf16.msra.mxu0 %v753
        %771 = vmatpush.bf16.msra.mxu0 %v752
        %772 = vmatpush.bf16.msra.mxu0 %v751
        %773 = vmatpush.bf16.msra.mxu0 %v750
        %774 = vmatmul.bf16.gmra.mxu0 %v701
        %v775 = vpop.f32.mrf.mxu0
        %v776 = vadd.f32 0.0, %v775
        %v777 = vpop.f32.mrf.mxu0
        %778 = vdwg.mxu0
        %v779 = vadd.f32 %v700, %v776
        %780 = vst.msk [vmem:[#allocation4] sm:$0xff] %vm589, %v779
        %v781 = vld [vmem:[#allocation3 + $0x4] sm:$0xf]
        %v782 = vld [vmem:[#allocation2 + $0x4] sm:$0xf]
        %v783 = vld [vmem:[%s652 + $0x4] sm:$0xf]
        %784 = vmatpush.bf16.xpose.msra.mxu0 0
        %785 = vmatpush.bf16.xpose.msra.mxu0 0
        %786 = vmatpush.bf16.xpose.msra.mxu0 0
        %787 = vmatpush.bf16.xpose.msra.mxu0 0
        %788 = vmatpush.bf16.xpose.msra.mxu0 0
        %789 = vmatpush.bf16.xpose.msra.mxu0 0
        %790 = vmatpush.bf16.xpose.msra.mxu0 0
        %791 = vmatpush.bf16.xpose.msra.mxu0 %v782
        %792 = vmatmul.bf16.gmra.mxu0 %v781
        %v793 = vpop.f32.mrf.mxu0
        %v794 = vadd.f32 0.0, %v793
        %v795 = vpop.f32.mrf.mxu0
        %796 = vdwg.mxu0
        %v797 = vsel %vm667, %v794, -inf
        %798 = vmax.xlane.f32.xlu0 %v797
        %v799 = vpop.xlane.xlu0 %798
        %v800 = vsub.f32 %v794, %v799
        %v801 = vmul.f32 %v800, 1.442695
        %v802 = vpow.pop %v801
        %v803 = vsel %vm667, %v802, 0.0
        %804 = vadd.xlane.f32.xlu0 %v803
        %v805 = vpop.xlane.xlu0 %804
        %v806 = vrcp.pop %v805
        %v807 = vmul.f32 %v802, %v806
        %v808 = vpack.c.bf16 %v807, %v807
        %v810 = vsel %vm667, %v808, 0
        %v813 = vsel %vm683, %v783, 0
        %815 = vmatpush.bf16.msra.mxu0 0
        %816 = vmatpush.bf16.msra.mxu0 0
        %817 = vmatpush.bf16.msra.mxu0 0
        %818 = vmatpush.bf16.msra.mxu0 0
        %819 = vmatpush.bf16.msra.mxu0 0
        %820 = vmatpush.bf16.msra.mxu0 0
        %821 = vmatpush.bf16.msra.mxu0 0
        %822 = vmatpush.bf16.msra.mxu0 %v813
        %823 = vmatmul.bf16.gmra.mxu0 %v810
        %v824 = vpop.f32.mrf.mxu0
        %v825 = vadd.f32 0.0, %v824
        %v826 = vpop.f32.mrf.mxu0
        %827 = vdwg.mxu0
        %v828 = vld [vmem:[#allocation4] sm:$0xff]
        %v829 = vpack.c.bf16 %v825, %v825
        %v830 = vld [vmem:[%s5 + $0x40] sm:$0xf]
        %v831 = vld [vmem:[%s5 + $0x44] sm:$0xf]
        %v832 = vld [vmem:[%s5 + $0x48] sm:$0xf]
        %v833 = vld [vmem:[%s5 + $0x4c] sm:$0xf]
        %v834 = vld [vmem:[%s5 + $0x50] sm:$0xf]
        %v835 = vld [vmem:[%s5 + $0x54] sm:$0xf]
        %v836 = vld [vmem:[%s5 + $0x58] sm:$0xf]
        %v837 = vld [vmem:[%s5 + $0x5c] sm:$0xf]
        %v838 = vld [vmem:[%s5 + $0x60] sm:$0xf]
        %v839 = vld [vmem:[%s5 + $0x64] sm:$0xf]
        %v840 = vld [vmem:[%s5 + $0x68] sm:$0xf]
        %v841 = vld [vmem:[%s5 + $0x6c] sm:$0xf]
        %v842 = vld [vmem:[%s5 + $0x70] sm:$0xf]
        %v843 = vld [vmem:[%s5 + $0x74] sm:$0xf]
        %v844 = vld [vmem:[%s5 + $0x78] sm:$0xf]
        %v845 = vld [vmem:[%s5 + $0x7c] sm:$0xf]
        %v862 = vunpack.c.l.b16 %v830
        %v863 = vunpack.c.l.b16 %v831
        %v864 = vunpack.c.l.b16 %v832
        %v865 = vunpack.c.l.b16 %v833
        %v866 = vunpack.c.l.b16 %v834
        %v867 = vunpack.c.l.b16 %v835
        %v868 = vunpack.c.l.b16 %v836
        %v869 = vunpack.c.l.b16 %v837
        %v870 = vunpack.c.l.b16 %v838
        %v871 = vunpack.c.l.b16 %v839
        %v872 = vunpack.c.l.b16 %v840
        %v873 = vunpack.c.l.b16 %v841
        %v874 = vunpack.c.l.b16 %v842
        %v875 = vunpack.c.l.b16 %v843
        %v876 = vunpack.c.l.b16 %v844
        %v877 = vunpack.c.l.b16 %v845
        %v878 = vpack.c.b16 %v863, %v862
        %v879 = vpack.c.b16 %v865, %v864
        %v880 = vpack.c.b16 %v867, %v866
        %v881 = vpack.c.b16 %v869, %v868
        %v882 = vpack.c.b16 %v871, %v870
        %v883 = vpack.c.b16 %v873, %v872
        %v884 = vpack.c.b16 %v875, %v874
        %v885 = vpack.c.b16 %v877, %v876
        %894 = vmatpush.bf16.msra.mxu0 %v885
        %895 = vmatpush.bf16.msra.mxu0 %v884
        %896 = vmatpush.bf16.msra.mxu0 %v883
        %897 = vmatpush.bf16.msra.mxu0 %v882
        %898 = vmatpush.bf16.msra.mxu0 %v881
        %899 = vmatpush.bf16.msra.mxu0 %v880
        %900 = vmatpush.bf16.msra.mxu0 %v879
        %901 = vmatpush.bf16.msra.mxu0 %v878
        %902 = vmatmul.bf16.gmra.mxu0 %v829
        %v903 = vpop.f32.mrf.mxu0
        %v904 = vadd.f32 0.0, %v903
        %v905 = vpop.f32.mrf.mxu0
        %906 = vdwg.mxu0
        %v907 = vadd.f32 %v828, %v904
        %908 = vst.msk [vmem:[#allocation4] sm:$0xff] %vm589, %v907
        %v909 = vld [vmem:[#allocation3 + $0x8] sm:$0xf]
        %v910 = vld [vmem:[#allocation2 + $0x8] sm:$0xf]
        %v911 = vld [vmem:[%s652 + $0x8] sm:$0xf]
        %912 = vmatpush.bf16.xpose.msra.mxu0 0
        %913 = vmatpush.bf16.xpose.msra.mxu0 0
        %914 = vmatpush.bf16.xpose.msra.mxu0 0
        %915 = vmatpush.bf16.xpose.msra.mxu0 0
        %916 = vmatpush.bf16.xpose.msra.mxu0 0
        %917 = vmatpush.bf16.xpose.msra.mxu0 0
        %918 = vmatpush.bf16.xpose.msra.mxu0 0
        %919 = vmatpush.bf16.xpose.msra.mxu0 %v910
        %920 = vmatmul.bf16.gmra.mxu0 %v909
        %v921 = vpop.f32.mrf.mxu0
        %v922 = vadd.f32 0.0, %v921
        %v923 = vpop.f32.mrf.mxu0
        %924 = vdwg.mxu0
        %v925 = vsel %vm667, %v922, -inf
        %926 = vmax.xlane.f32.xlu0 %v925
        %v927 = vpop.xlane.xlu0 %926
        %v928 = vsub.f32 %v922, %v927
        %v929 = vmul.f32 %v928, 1.442695
        %v930 = vpow.pop %v929
        %v931 = vsel %vm667, %v930, 0.0
        %932 = vadd.xlane.f32.xlu0 %v931
        %v933 = vpop.xlane.xlu0 %932
        %v934 = vrcp.pop %v933
        %v935 = vmul.f32 %v930, %v934
        %v936 = vpack.c.bf16 %v935, %v935
        %v938 = vsel %vm667, %v936, 0
        %v941 = vsel %vm683, %v911, 0
        %943 = vmatpush.bf16.msra.mxu0 0
        %944 = vmatpush.bf16.msra.mxu0 0
        %945 = vmatpush.bf16.msra.mxu0 0
        %946 = vmatpush.bf16.msra.mxu0 0
        %947 = vmatpush.bf16.msra.mxu0 0
        %948 = vmatpush.bf16.msra.mxu0 0
        %949 = vmatpush.bf16.msra.mxu0 0
        %950 = vmatpush.bf16.msra.mxu0 %v941
        %951 = vmatmul.bf16.gmra.mxu0 %v938
        %v952 = vpop.f32.mrf.mxu0
        %v953 = vadd.f32 0.0, %v952
        %v954 = vpop.f32.mrf.mxu0
        %955 = vdwg.mxu0
        %v956 = vld [vmem:[#allocation4] sm:$0xff]
        %v957 = vpack.c.bf16 %v953, %v953
        %v958 = vld [vmem:[%s5 + $0x80] sm:$0xf]
        %v959 = vld [vmem:[%s5 + $0x84] sm:$0xf]
        %v960 = vld [vmem:[%s5 + $0x88] sm:$0xf]
        %v961 = vld [vmem:[%s5 + $0x8c] sm:$0xf]
        %v962 = vld [vmem:[%s5 + $0x90] sm:$0xf]
        %v963 = vld [vmem:[%s5 + $0x94] sm:$0xf]
        %v964 = vld [vmem:[%s5 + $0x98] sm:$0xf]
        %v965 = vld [vmem:[%s5 + $0x9c] sm:$0xf]
        %v966 = vld [vmem:[%s5 + $0xa0] sm:$0xf]
        %v967 = vld [vmem:[%s5 + $0xa4] sm:$0xf]
        %v968 = vld [vmem:[%s5 + $0xa8] sm:$0xf]
        %v969 = vld [vmem:[%s5 + $0xac] sm:$0xf]
        %v970 = vld [vmem:[%s5 + $0xb0] sm:$0xf]
        %v971 = vld [vmem:[%s5 + $0xb4] sm:$0xf]
        %v972 = vld [vmem:[%s5 + $0xb8] sm:$0xf]
        %v973 = vld [vmem:[%s5 + $0xbc] sm:$0xf]
        %v990 = vunpack.c.l.b16 %v958
        %v991 = vunpack.c.l.b16 %v959
        %v992 = vunpack.c.l.b16 %v960
        %v993 = vunpack.c.l.b16 %v961
        %v994 = vunpack.c.l.b16 %v962
        %v995 = vunpack.c.l.b16 %v963
        %v996 = vunpack.c.l.b16 %v964
        %v997 = vunpack.c.l.b16 %v965
        %v998 = vunpack.c.l.b16 %v966
        %v999 = vunpack.c.l.b16 %v967
        %v1000 = vunpack.c.l.b16 %v968
        %v1001 = vunpack.c.l.b16 %v969
        %v1002 = vunpack.c.l.b16 %v970
        %v1003 = vunpack.c.l.b16 %v971
        %v1004 = vunpack.c.l.b16 %v972
        %v1005 = vunpack.c.l.b16 %v973
        %v1006 = vpack.c.b16 %v991, %v990
        %v1007 = vpack.c.b16 %v993, %v992
        %v1008 = vpack.c.b16 %v995, %v994
        %v1009 = vpack.c.b16 %v997, %v996
        %v1010 = vpack.c.b16 %v999, %v998
        %v1011 = vpack.c.b16 %v1001, %v1000
        %v1012 = vpack.c.b16 %v1003, %v1002
        %v1013 = vpack.c.b16 %v1005, %v1004
        %1022 = vmatpush.bf16.msra.mxu0 %v1013
        %1023 = vmatpush.bf16.msra.mxu0 %v1012
        %1024 = vmatpush.bf16.msra.mxu0 %v1011
        %1025 = vmatpush.bf16.msra.mxu0 %v1010
        %1026 = vmatpush.bf16.msra.mxu0 %v1009
        %1027 = vmatpush.bf16.msra.mxu0 %v1008
        %1028 = vmatpush.bf16.msra.mxu0 %v1007
        %1029 = vmatpush.bf16.msra.mxu0 %v1006
        %1030 = vmatmul.bf16.gmra.mxu0 %v957
        %v1031 = vpop.f32.mrf.mxu0
        %v1032 = vadd.f32 0.0, %v1031
        %v1033 = vpop.f32.mrf.mxu0
        %1034 = vdwg.mxu0
        %v1035 = vadd.f32 %v956, %v1032
        %1036 = vst.msk [vmem:[#allocation4] sm:$0xff] %vm589, %v1035
        %v1037 = vld [vmem:[#allocation3 + $0xc] sm:$0xf]
        %v1038 = vld [vmem:[#allocation2 + $0xc] sm:$0xf]
        %v1039 = vld [vmem:[%s652 + $0xc] sm:$0xf]
        %1040 = vmatpush.bf16.xpose.msra.mxu0 0
        %1041 = vmatpush.bf16.xpose.msra.mxu0 0
        %1042 = vmatpush.bf16.xpose.msra.mxu0 0
        %1043 = vmatpush.bf16.xpose.msra.mxu0 0
        %1044 = vmatpush.bf16.xpose.msra.mxu0 0
        %1045 = vmatpush.bf16.xpose.msra.mxu0 0
        %1046 = vmatpush.bf16.xpose.msra.mxu0 0
        %1047 = vmatpush.bf16.xpose.msra.mxu0 %v1038
        %1048 = vmatmul.bf16.gmra.mxu0 %v1037
        %v1049 = vpop.f32.mrf.mxu0
        %v1050 = vadd.f32 0.0, %v1049
        %v1051 = vpop.f32.mrf.mxu0
        %1052 = vdwg.mxu0
        %v1053 = vsel %vm667, %v1050, -inf
        %1054 = vmax.xlane.f32.xlu0 %v1053
        %v1055 = vpop.xlane.xlu0 %1054
        %v1056 = vsub.f32 %v1050, %v1055
        %v1057 = vmul.f32 %v1056, 1.442695
        %v1058 = vpow.pop %v1057
        %v1059 = vsel %vm667, %v1058, 0.0
        %1060 = vadd.xlane.f32.xlu0 %v1059
        %v1061 = vpop.xlane.xlu0 %1060
        %v1062 = vrcp.pop %v1061
        %v1063 = vmul.f32 %v1058, %v1062
        %v1064 = vpack.c.bf16 %v1063, %v1063
        %v1066 = vsel %vm667, %v1064, 0
        %v1069 = vsel %vm683, %v1039, 0
        %1071 = vmatpush.bf16.msra.mxu0 0
        %1072 = vmatpush.bf16.msra.mxu0 0
        %1073 = vmatpush.bf16.msra.mxu0 0
        %1074 = vmatpush.bf16.msra.mxu0 0
        %1075 = vmatpush.bf16.msra.mxu0 0
        %1076 = vmatpush.bf16.msra.mxu0 0
        %1077 = vmatpush.bf16.msra.mxu0 0
        %1078 = vmatpush.bf16.msra.mxu0 %v1069
        %1079 = vmatmul.bf16.gmra.mxu0 %v1066
        %v1080 = vpop.f32.mrf.mxu0
        %v1081 = vadd.f32 0.0, %v1080
        %v1082 = vpop.f32.mrf.mxu0
        %1083 = vdwg.mxu0
        %v1084 = vld [vmem:[#allocation4] sm:$0xff]
        %v1085 = vpack.c.bf16 %v1081, %v1081
        %v1086 = vld [vmem:[%s5 + $0xc0] sm:$0xf]
        %v1087 = vld [vmem:[%s5 + $0xc4] sm:$0xf]
        %v1088 = vld [vmem:[%s5 + $0xc8] sm:$0xf]
        %v1089 = vld [vmem:[%s5 + $0xcc] sm:$0xf]
        %v1090 = vld [vmem:[%s5 + $0xd0] sm:$0xf]
        %v1091 = vld [vmem:[%s5 + $0xd4] sm:$0xf]
        %v1092 = vld [vmem:[%s5 + $0xd8] sm:$0xf]
        %v1093 = vld [vmem:[%s5 + $0xdc] sm:$0xf]
        %v1094 = vld [vmem:[%s5 + $0xe0] sm:$0xf]
        %v1095 = vld [vmem:[%s5 + $0xe4] sm:$0xf]
        %v1096 = vld [vmem:[%s5 + $0xe8] sm:$0xf]
        %v1097 = vld [vmem:[%s5 + $0xec] sm:$0xf]
        %v1098 = vld [vmem:[%s5 + $0xf0] sm:$0xf]
        %v1099 = vld [vmem:[%s5 + $0xf4] sm:$0xf]
        %v1100 = vld [vmem:[%s5 + $0xf8] sm:$0xf]
        %v1101 = vld [vmem:[%s5 + $0xfc] sm:$0xf]
        %v1118 = vunpack.c.l.b16 %v1086
        %v1119 = vunpack.c.l.b16 %v1087
        %v1120 = vunpack.c.l.b16 %v1088
        %v1121 = vunpack.c.l.b16 %v1089
        %v1122 = vunpack.c.l.b16 %v1090
        %v1123 = vunpack.c.l.b16 %v1091
        %v1124 = vunpack.c.l.b16 %v1092
        %v1125 = vunpack.c.l.b16 %v1093
        %v1126 = vunpack.c.l.b16 %v1094
        %v1127 = vunpack.c.l.b16 %v1095
        %v1128 = vunpack.c.l.b16 %v1096
        %v1129 = vunpack.c.l.b16 %v1097
        %v1130 = vunpack.c.l.b16 %v1098
        %v1131 = vunpack.c.l.b16 %v1099
        %v1132 = vunpack.c.l.b16 %v1100
        %v1133 = vunpack.c.l.b16 %v1101
        %v1134 = vpack.c.b16 %v1119, %v1118
        %v1135 = vpack.c.b16 %v1121, %v1120
        %v1136 = vpack.c.b16 %v1123, %v1122
        %v1137 = vpack.c.b16 %v1125, %v1124
        %v1138 = vpack.c.b16 %v1127, %v1126
        %v1139 = vpack.c.b16 %v1129, %v1128
        %v1140 = vpack.c.b16 %v1131, %v1130
        %v1141 = vpack.c.b16 %v1133, %v1132
        %1150 = vmatpush.bf16.msra.mxu0 %v1141
        %1151 = vmatpush.bf16.msra.mxu0 %v1140
        %1152 = vmatpush.bf16.msra.mxu0 %v1139
        %1153 = vmatpush.bf16.msra.mxu0 %v1138
        %1154 = vmatpush.bf16.msra.mxu0 %v1137
        %1155 = vmatpush.bf16.msra.mxu0 %v1136
        %1156 = vmatpush.bf16.msra.mxu0 %v1135
        %1157 = vmatpush.bf16.msra.mxu0 %v1134
        %1158 = vmatmul.bf16.gmra.mxu0 %v1085
        %v1159 = vpop.f32.mrf.mxu0
        %v1160 = vadd.f32 0.0, %v1159
        %v1161 = vpop.f32.mrf.mxu0
        %1162 = vdwg.mxu0
        %v1163 = vadd.f32 %v1084, %v1160
        %1164 = vst.msk [vmem:[#allocation4] sm:$0xff] %vm589, %v1163
        %v1165 = vld [vmem:[#allocation4] sm:$0xff]
        %v1166 = vld [vmem:[%s6] sm:$0x1]
        %v1168 = vperm.slane %v1166, 0
        %v1170 = vadd.f32 %v1165, %v1168
        %1171 = vst.msk [vmem:[%s283] sm:$0xff] %vm589, %v1170
        %s1172 = sand.u32 %s195, 1
        %s1173 = scalar_lea.sflag [#allocation6], %s1172
        %s1174 = sand.u32 %s195, 1
        %s1175 = smul.addr %s1174, 8
        %s1176 = scalar_lea.vmem [#allocation5], %s1175
        // Predicated region
        $region53: #{tpu_custom_call.1} parent=47 // pred_check
          %p1177 = pneg %p205
        $region54: #{tpu_custom_call.1} parent=47 // pred_check_branch
          %1179 = sbr.rel (%p1177) target = $region56
        $region55: #{tpu_custom_call.1} parent=47 // pred_region
          %1181 = vsyncadd %s1173, 0
          %s1182 = sadd.s32 %s26, %s25
          %s1183 = smul.addr %s1182, 8
          %s1184 = scalar_lea.hbm %s7, %s1183
          %s1186 = sshll.u32 %s1176, 4
          %s1187 = int_to_ptr.vmem [resolvable:$true] %s1186
          %s1188 = sshll.u32 %s1184, 4
          %s1189 = int_to_ptr.hbm [resolvable:$true] %s1188
          %1191 = dma.vmem_to_hbm [thread:$0]  %s1187, 128, %s1189, %s1173
        $region56: #{tpu_custom_call.1} parent=47 // pred_fallthru
          _
      $region48: #{tpu_custom_call.1} parent=5 // pred_fallthru
        _
      %p1192 = scmp.le.s32.totalorder 2, %s16
      // Predicated region
      $region57: #{tpu_custom_call.1} parent=5 // pred_check
        %p1193 = pneg %p1192
      $region58: #{tpu_custom_call.1} parent=5 // pred_check_branch
        %1195 = sbr.rel (%p1193) target = $region60
      $region59: #{tpu_custom_call.1} parent=5 // pred_region
        %s1196 = ssub.s32 %s16, 2
        // Predicated region
        $region61: #{tpu_custom_call.1} parent=59 // pred_check
          %p1197 = pneg %p211
        $region62: #{tpu_custom_call.1} parent=59 // pred_check_branch
          %1199 = sbr.rel (%p1197) target = $region64
        $region63: #{tpu_custom_call.1} parent=59 // pred_region
          %s1200 = sand.u32 %s196, 1
          %s1201 = scalar_lea.sflag [#allocation6], %s1200
          %s1202 = sand.u32 %s196, 1
          %s1203 = smul.addr %s1202, 8
          %s1204 = scalar_lea.vmem [#allocation5], %s1203
          %1206 = dma.done %s1201, 128
        $region64: #{tpu_custom_call.1} parent=59 // pred_fallthru
          _
      $region60: #{tpu_custom_call.1} parent=5 // pred_fallthru
        _
    $region6: #{tpu_custom_call.1} parent=1 // loop_footer
      %s20 = sadd.s32 1, %s16
    $region7: #{tpu_custom_call.1} parent=1 // loop_footer_branch
      %15 = sbr.rel target = $region3
    $region8: #{tpu_custom_call.1} parent=1 // loop_exit
      _
    %1207 = vsyncpa [#allocation6], 1
    %s1208 = scalar_lea.sflag [#allocation6], 1
    %1209 = vsyncpa %s1208, 1

</llo_original>
